<compile_context>
chip_gen: v5e
topology: v5e:2x2
jax: 0.10.0
libtpu: 0.0.40
codegen_flags: <defaults>
</compile_context>

<pallas_src>
import jax
import jax.numpy as jnp
from jax.experimental import pallas as pl
from jax.experimental.pallas import tpu as pltpu


def _make_flow_kernel(num_layers):
    def flow_kernel(eps_ref, mu0_ref, sigma_ref, mu_pzk_ref, var_pzk_ref,
                    w_ref, u_hat_ref, b_ref, wu_hat_ref,
                    z0_ref, zk_ref, stats_ref):
        eps = eps_ref[...]                                   # (T, D)
        mu0 = mu0_ref[...]                                   # (1, D)
        sigma = sigma_ref[...]                               # (1, D)

        # Reparameterize: z = mu0 + exp(0.5*logvar0) * eps  (row broadcast).
        z = mu0 + sigma * eps                                # (T, D)
        z0_ref[...] = z

        # log_prob_z0 = sum(-0.5*((z - zmu)/sigma)^2) == -0.5*sum(eps^2).
        lp0 = -0.5 * jnp.sum(eps * eps, axis=1, keepdims=True)   # (T, 1)
        log_det = jnp.zeros_like(lp0)                             # (T, 1)

        # num_layers is a small static count -> unrolled Python loop.
        # (Switch to lax.fori_loop(..., unroll=True) if L grows beyond ~8.)
        for l in range(num_layers):
            w_l = w_ref[l:l + 1, :]                          # (1, D)
            u_hat_l = u_hat_ref[l:l + 1, :]                  # (1, D)  (hoisted)
            b_l = b_ref[l:l + 1, :]                          # (1, 1)
            wu_l = wu_hat_ref[l:l + 1, :]                    # (1, 1)  (hoisted)

            # Note: for production-sized D (>=128) this row reduction should
            # go through the MXU via jnp.dot(z, w_l.T, preferred_element_type).
            lin = jnp.sum(z * w_l, axis=1, keepdims=True) + b_l   # (T, 1)
            t = jnp.tanh(lin)                                      # (T, 1)
            z = z + u_hat_l * t                                    # (T, D)
            log_det = log_det + jnp.log(jnp.abs(1.0 + (1.0 - t * t) * wu_l))

        zk_ref[...] = z

        diff = z - mu_pzk_ref[...]
        lpk = jnp.sum(-0.5 * diff * diff / var_pzk_ref[...],
                      axis=1, keepdims=True)                  # (T, 1)

        # Single packed per-row-scalar output stream: [lp0 | log_det | lpk].
        stats_ref[:, 0:1] = lp0
        stats_ref[:, 1:2] = log_det
        stats_ref[:, 2:3] = lpk

    return flow_kernel


def flow_forward(eps, mu0, logvar0, mu_pzk, var_pzk, w, u, b, *, tile_n=256):
    """Pallas implementation of Flow.forward.

    eps:            (N, D) standard-normal draws (the torch.randn in
                    _reparameterize, generated outside for determinism)
    mu0, logvar0:   (1, D)
    mu_pzk, var_pzk:(N, D)
    w, u:           (L, D) planar-flow parameters
    b:              (L, 1)
    Returns (z0, zmu, zlogvar, zk, log_prob_z0, log_det, log_prob_zk).
    """
    f32 = jnp.float32
    eps = eps.astype(f32)
    mu0 = mu0.astype(f32)
    logvar0 = logvar0.astype(f32)
    mu_pzk = mu_pzk.astype(f32)
    var_pzk = var_pzk.astype(f32)
    w = w.astype(f32)
    u = u.astype(f32)
    b = b.astype(f32)

    n, d = eps.shape
    num_layers = w.shape[0]

    # --- Hoisted, batch-independent quantities (computed once, not per tile).
    sigma = jnp.exp(0.5 * logvar0)                                  # (1, D)
    dot = jnp.sum(w * u, axis=1, keepdims=True)                     # (L, 1)
    wnorm = jnp.sum(w * w, axis=1, keepdims=True)                   # (L, 1)
    # softplus(dot) == log(1 + exp(dot)), numerically stable for large dot.
    u_hat = u + (jax.nn.softplus(dot) - 1.0 - dot) * w / wnorm      # (L, D)
    wu_hat = jnp.sum(w * u_hat, axis=1, keepdims=True)              # (L, 1)

    # --- Batch tiling. Largest tile that comfortably fits VMEM; re-derive per
    # generation if D grows (v7x has 64 MiB physical VMEM vs 128 on v5e/v6e).
    tile_n = min(tile_n, n)
    num_tiles = pl.cdiv(n, tile_n)

    row_spec = pl.BlockSpec((tile_n, d), lambda i: (i, 0))
    const = lambda shape: pl.BlockSpec(shape, lambda i: (0, 0))

    out_shapes = (
        jax.ShapeDtypeStruct((n, d), f32),   # z0
        jax.ShapeDtypeStruct((n, d), f32),   # zk
        jax.ShapeDtypeStruct((n, 3), f32),   # packed [lp0 | log_det | lpk]
    )

    z0, zk, stats = pl.pallas_call(
        _make_flow_kernel(num_layers),
        out_shape=out_shapes,
        grid=(num_tiles,),
        in_specs=[
            row_spec,                        # eps
            const((1, d)),                   # mu0
            const((1, d)),                   # sigma
            row_spec,                        # mu_pzk
            row_spec,                        # var_pzk
            const((num_layers, d)),          # w
            const((num_layers, d)),          # u_hat
            const((num_layers, 1)),          # b
            const((num_layers, 1)),          # wu_hat
        ],
        out_specs=(
            row_spec,                                        # z0
            row_spec,                                        # zk
            pl.BlockSpec((tile_n, 3), lambda i: (i, 0)),     # stats
        ),
        compiler_params=pltpu.CompilerParams(
            dimension_semantics=("parallel",)),              # megacore on v7x
    )(eps, mu0, sigma, mu_pzk, var_pzk, w, u_hat, b, wu_hat)

    # zmu / zlogvar are exact broadcasts of the (1, D) parameters; reconstruct
    # lazily instead of streaming two extra (N, D) arrays through HBM.
    zmu = jnp.broadcast_to(mu0, (n, d))
    zlogvar = jnp.broadcast_to(logvar0, (n, d))

    return (z0, zmu, zlogvar, zk, stats[:, 0], stats[:, 1], stats[:, 2])


def flow_forward_ref(eps, mu0, logvar0, mu_pzk, var_pzk, w, u, b):
    """Pure-JAX reference mirroring the PyTorch forward (for validation)."""
    n, d = eps.shape
    sigma = jnp.exp(0.5 * logvar0)
    zmu = jnp.ones((n, d)) * mu0
    zlogvar = jnp.ones((n, d)) * logvar0
    z = zmu + jnp.exp(0.5 * zlogvar) * eps
    z0 = z
    lp0 = jnp.sum(-0.5 * ((z - zmu) / sigma) ** 2, axis=1)
    ld = jnp.zeros((n,))
    for l in range(w.shape[0]):
        wl, ul, bl = w[l], u[l], b[l, 0]
        dot = jnp.sum(wl * ul)
        u_hat = ul + (jnp.log(1.0 + jnp.exp(dot)) - 1.0 - dot) * wl / jnp.sum(wl ** 2)
        lin = (z @ wl + bl)[:, None]
        t = jnp.tanh(lin)
        z = z + u_hat[None, :] * t
        psi_u = (1.0 - t[:, 0] ** 2) * jnp.sum(wl * u_hat)
        ld = ld + jnp.log(jnp.abs(1.0 + psi_u))
    lpk = jnp.sum(-0.5 * ((z - mu_pzk) ** 2 / var_pzk), axis=1)
    return z0, zmu, zlogvar, z, lp0, ld, lpk


if __name__ == "__main__":
    N = 256          # batch size (the `n` argument of Flow.forward)
    D = 8            # latent dimension
    L = 4            # flow_layers
    TILE_N = 128     # batch tile -> 2 pipelined grid steps in this demo

    key = jax.random.PRNGKey(0)
    k_eps, k_w, k_u, k_b, k_mu, k_var = jax.random.split(key, 6)

    # Deterministic "module parameters".
    mu0 = jnp.linspace(-1.0, 1.0, D, dtype=jnp.float32).reshape(1, D)
    logvar0 = jnp.linspace(-0.5, 0.5, D, dtype=jnp.float32).reshape(1, D)
    w = 0.5 * jax.random.normal(k_w, (L, D), dtype=jnp.float32)
    u = 0.5 * jax.random.normal(k_u, (L, D), dtype=jnp.float32)
    b = 0.1 * jax.random.normal(k_b, (L, 1), dtype=jnp.float32)

    # Forward inputs. The torch.randn inside _reparameterize is passed in as
    # `eps` so the kernel is deterministic / comparable to the reference.
    eps = jax.random.normal(k_eps, (N, D), dtype=jnp.float32)
    mu_pzk = jax.random.normal(k_mu, (N, D), dtype=jnp.float32)
    var_pzk = jnp.exp(0.3 * jax.random.normal(k_var, (N, D), dtype=jnp.float32))

    outs = flow_forward(eps, mu0, logvar0, mu_pzk, var_pzk, w, u, b,
                        tile_n=TILE_N)
    outs = jax.block_until_ready(outs)

    refs = flow_forward_ref(eps, mu0, logvar0, mu_pzk, var_pzk, w, u, b)
    names = ["z0", "zmu", "zlogvar", "zk",
             "log_prob_z0", "log_det", "log_prob_zk"]
    for name, o, r in zip(names, outs, refs):
        assert o.shape == r.shape, (name, o.shape, r.shape)
        assert jnp.allclose(o, r, atol=1e-4, rtol=1e-4), name

    print("KERNEL_OK")
</pallas_src>

<mosaic_0001>
module attributes {stable_mosaic.version = 11 : i64} {
  func.func @flow_kernel(%arg0: i32, %arg1: memref<128x8xf32, #tpu.memory_space<vmem>>, %arg2: memref<1x8xf32, #tpu.memory_space<vmem>>, %arg3: memref<1x8xf32, #tpu.memory_space<vmem>>, %arg4: memref<128x8xf32, #tpu.memory_space<vmem>>, %arg5: memref<128x8xf32, #tpu.memory_space<vmem>>, %arg6: memref<4x8xf32, #tpu.memory_space<vmem>>, %arg7: memref<4x8xf32, #tpu.memory_space<vmem>>, %arg8: memref<4x1xf32, #tpu.memory_space<vmem>>, %arg9: memref<4x1xf32, #tpu.memory_space<vmem>>, %arg10: memref<128x8xf32, #tpu.memory_space<vmem>>, %arg11: memref<128x8xf32, #tpu.memory_space<vmem>>, %arg12: memref<128x3xf32, #tpu.memory_space<vmem>>) attributes {dimension_semantics = [#tpu.dimension_semantics<parallel>], iteration_bounds = array<i64: 2>, scalar_prefetch = 0 : i64, scratch_operands = 0 : i64, tpu.core_type = #tpu.core_type<tc>, window_params = [{transform_indices = @transform_0, window_bounds = array<i64: 128, 8>}, {pipeline_mode = #tpu.pipeline_mode<synchronous>, transform_indices = @transform_1, window_bounds = array<i64: 1, 8>}, {pipeline_mode = #tpu.pipeline_mode<synchronous>, transform_indices = @transform_2, window_bounds = array<i64: 1, 8>}, {transform_indices = @transform_3, window_bounds = array<i64: 128, 8>}, {transform_indices = @transform_4, window_bounds = array<i64: 128, 8>}, {pipeline_mode = #tpu.pipeline_mode<synchronous>, transform_indices = @transform_5, window_bounds = array<i64: 4, 8>}, {pipeline_mode = #tpu.pipeline_mode<synchronous>, transform_indices = @transform_6, window_bounds = array<i64: 4, 8>}, {pipeline_mode = #tpu.pipeline_mode<synchronous>, transform_indices = @transform_7, window_bounds = array<i64: 4, 1>}, {pipeline_mode = #tpu.pipeline_mode<synchronous>, transform_indices = @transform_8, window_bounds = array<i64: 4, 1>}, {transform_indices = @transform_9, window_bounds = array<i64: 128, 8>}, {transform_indices = @transform_10, window_bounds = array<i64: 128, 8>}, {transform_indices = @transform_11, window_bounds = array<i64: 128, 3>}]} {
    %c0 = arith.constant 0 : index
    %c0_0 = arith.constant 0 : index
    %0 = vector.load %arg1[%c0, %c0_0] : memref<128x8xf32, #tpu.memory_space<vmem>>, vector<128x8xf32>
    %c0_1 = arith.constant 0 : index
    %c0_2 = arith.constant 0 : index
    %1 = vector.load %arg2[%c0_1, %c0_2] : memref<1x8xf32, #tpu.memory_space<vmem>>, vector<1x8xf32>
    %c0_3 = arith.constant 0 : index
    %c0_4 = arith.constant 0 : index
    %2 = vector.load %arg3[%c0_3, %c0_4] : memref<1x8xf32, #tpu.memory_space<vmem>>, vector<1x8xf32>
    %3 = vector.broadcast %2 : vector<1x8xf32> to vector<128x8xf32>
    %4 = arith.mulf %3, %0 : vector<128x8xf32>
    %5 = vector.broadcast %1 : vector<1x8xf32> to vector<128x8xf32>
    %6 = arith.addf %5, %4 : vector<128x8xf32>
    %c0_5 = arith.constant 0 : index
    %c0_6 = arith.constant 0 : index
    %7 = vector.load %arg10[%c0_5, %c0_6] : memref<128x8xf32, #tpu.memory_space<vmem>>, vector<128x8xf32>
    tpu.vector_store %arg10[%c0_5, %c0_6], %6 {strides = array<i32>} : memref<128x8xf32, #tpu.memory_space<vmem>>, vector<128x8xf32>,
    %8 = arith.mulf %0, %0 : vector<128x8xf32>
    %cst = arith.constant dense<0.000000e+00> : vector<128xf32>
    %9 = vector.multi_reduction <add>, %8, %cst [1] : vector<128x8xf32> to vector<128xf32>
    %10 = vector.shape_cast %9 : vector<128xf32> to vector<128x1xf32>
    %cst_7 = arith.constant -5.000000e-01 : f32
    %11 = vector.broadcast %cst_7 : f32 to vector<128x1xf32>
    %12 = arith.mulf %11, %10 : vector<128x1xf32>
    %cst_8 = arith.constant 0.000000e+00 : f32
    %13 = vector.broadcast %cst_8 : f32 to vector<128x1xf32>
    %c0_9 = arith.constant 0 : index
    %c0_10 = arith.constant 0 : index
    %14 = vector.load %arg6[%c0_9, %c0_10] : memref<4x8xf32, #tpu.memory_space<vmem>>, vector<1x8xf32>
    %c0_11 = arith.constant 0 : index
    %c0_12 = arith.constant 0 : index
    %15 = vector.load %arg7[%c0_11, %c0_12] : memref<4x8xf32, #tpu.memory_space<vmem>>, vector<1x8xf32>
    %c0_13 = arith.constant 0 : index
    %c0_14 = arith.constant 0 : index
    %16 = vector.load %arg8[%c0_13, %c0_14] : memref<4x1xf32, #tpu.memory_space<vmem>>, vector<1x1xf32>
    %c0_15 = arith.constant 0 : index
    %c0_16 = arith.constant 0 : index
    %17 = vector.load %arg9[%c0_15, %c0_16] : memref<4x1xf32, #tpu.memory_space<vmem>>, vector<1x1xf32>
    %18 = vector.broadcast %14 : vector<1x8xf32> to vector<128x8xf32>
    %19 = arith.mulf %6, %18 : vector<128x8xf32>
    %cst_17 = arith.constant dense<0.000000e+00> : vector<128xf32>
    %20 = vector.multi_reduction <add>, %19, %cst_17 [1] : vector<128x8xf32> to vector<128xf32>
    %21 = vector.shape_cast %20 : vector<128xf32> to vector<128x1xf32>
    %22 = vector.broadcast %16 : vector<1x1xf32> to vector<128x1xf32>
    %23 = arith.addf %21, %22 : vector<128x1xf32>
    %24 = math.tanh %23 : vector<128x1xf32>
    %25 = vector.broadcast %15 : vector<1x8xf32> to vector<128x8xf32>
    %26 = vector.broadcast %24 : vector<128x1xf32> to vector<128x8xf32>
    %27 = arith.mulf %25, %26 : vector<128x8xf32>
    %28 = arith.addf %6, %27 : vector<128x8xf32>
    %29 = arith.mulf %24, %24 : vector<128x1xf32>
    %cst_18 = arith.constant 1.000000e+00 : f32
    %30 = vector.broadcast %cst_18 : f32 to vector<128x1xf32>
    %31 = arith.subf %30, %29 : vector<128x1xf32>
    %32 = vector.broadcast %17 : vector<1x1xf32> to vector<128x1xf32>
    %33 = arith.mulf %31, %32 : vector<128x1xf32>
    %cst_19 = arith.constant 1.000000e+00 : f32
    %34 = vector.broadcast %cst_19 : f32 to vector<128x1xf32>
    %35 = arith.addf %34, %33 : vector<128x1xf32>
    %36 = math.absf %35 : vector<128x1xf32>
    %37 = math.log %36 : vector<128x1xf32>
    %38 = arith.addf %13, %37 : vector<128x1xf32>
    %c1 = arith.constant 1 : index
    %c0_20 = arith.constant 0 : index
    %39 = vector.load %arg6[%c1, %c0_20] : memref<4x8xf32, #tpu.memory_space<vmem>>, vector<1x8xf32>
    %c1_21 = arith.constant 1 : index
    %c0_22 = arith.constant 0 : index
    %40 = vector.load %arg7[%c1_21, %c0_22] : memref<4x8xf32, #tpu.memory_space<vmem>>, vector<1x8xf32>
    %c1_23 = arith.constant 1 : index
    %c0_24 = arith.constant 0 : index
    %41 = vector.load %arg8[%c1_23, %c0_24] : memref<4x1xf32, #tpu.memory_space<vmem>>, vector<1x1xf32>
    %c1_25 = arith.constant 1 : index
    %c0_26 = arith.constant 0 : index
    %42 = vector.load %arg9[%c1_25, %c0_26] : memref<4x1xf32, #tpu.memory_space<vmem>>, vector<1x1xf32>
    %43 = vector.broadcast %39 : vector<1x8xf32> to vector<128x8xf32>
    %44 = arith.mulf %28, %43 : vector<128x8xf32>
    %cst_27 = arith.constant dense<0.000000e+00> : vector<128xf32>
    %45 = vector.multi_reduction <add>, %44, %cst_27 [1] : vector<128x8xf32> to vector<128xf32>
    %46 = vector.shape_cast %45 : vector<128xf32> to vector<128x1xf32>
    %47 = vector.broadcast %41 : vector<1x1xf32> to vector<128x1xf32>
    %48 = arith.addf %46, %47 : vector<128x1xf32>
    %49 = math.tanh %48 : vector<128x1xf32>
    %50 = vector.broadcast %40 : vector<1x8xf32> to vector<128x8xf32>
    %51 = vector.broadcast %49 : vector<128x1xf32> to vector<128x8xf32>
    %52 = arith.mulf %50, %51 : vector<128x8xf32>
    %53 = arith.addf %28, %52 : vector<128x8xf32>
    %54 = arith.mulf %49, %49 : vector<128x1xf32>
    %cst_28 = arith.constant 1.000000e+00 : f32
    %55 = vector.broadcast %cst_28 : f32 to vector<128x1xf32>
    %56 = arith.subf %55, %54 : vector<128x1xf32>
    %57 = vector.broadcast %42 : vector<1x1xf32> to vector<128x1xf32>
    %58 = arith.mulf %56, %57 : vector<128x1xf32>
    %cst_29 = arith.constant 1.000000e+00 : f32
    %59 = vector.broadcast %cst_29 : f32 to vector<128x1xf32>
    %60 = arith.addf %59, %58 : vector<128x1xf32>
    %61 = math.absf %60 : vector<128x1xf32>
    %62 = math.log %61 : vector<128x1xf32>
    %63 = arith.addf %38, %62 : vector<128x1xf32>
    %c2 = arith.constant 2 : index
    %c0_30 = arith.constant 0 : index
    %64 = vector.load %arg6[%c2, %c0_30] : memref<4x8xf32, #tpu.memory_space<vmem>>, vector<1x8xf32>
    %c2_31 = arith.constant 2 : index
    %c0_32 = arith.constant 0 : index
    %65 = vector.load %arg7[%c2_31, %c0_32] : memref<4x8xf32, #tpu.memory_space<vmem>>, vector<1x8xf32>
    %c2_33 = arith.constant 2 : index
    %c0_34 = arith.constant 0 : index
    %66 = vector.load %arg8[%c2_33, %c0_34] : memref<4x1xf32, #tpu.memory_space<vmem>>, vector<1x1xf32>
    %c2_35 = arith.constant 2 : index
    %c0_36 = arith.constant 0 : index
    %67 = vector.load %arg9[%c2_35, %c0_36] : memref<4x1xf32, #tpu.memory_space<vmem>>, vector<1x1xf32>
    %68 = vector.broadcast %64 : vector<1x8xf32> to vector<128x8xf32>
    %69 = arith.mulf %53, %68 : vector<128x8xf32>
    %cst_37 = arith.constant dense<0.000000e+00> : vector<128xf32>
    %70 = vector.multi_reduction <add>, %69, %cst_37 [1] : vector<128x8xf32> to vector<128xf32>
    %71 = vector.shape_cast %70 : vector<128xf32> to vector<128x1xf32>
    %72 = vector.broadcast %66 : vector<1x1xf32> to vector<128x1xf32>
    %73 = arith.addf %71, %72 : vector<128x1xf32>
    %74 = math.tanh %73 : vector<128x1xf32>
    %75 = vector.broadcast %65 : vector<1x8xf32> to vector<128x8xf32>
    %76 = vector.broadcast %74 : vector<128x1xf32> to vector<128x8xf32>
    %77 = arith.mulf %75, %76 : vector<128x8xf32>
    %78 = arith.addf %53, %77 : vector<128x8xf32>
    %79 = arith.mulf %74, %74 : vector<128x1xf32>
    %cst_38 = arith.constant 1.000000e+00 : f32
    %80 = vector.broadcast %cst_38 : f32 to vector<128x1xf32>
    %81 = arith.subf %80, %79 : vector<128x1xf32>
    %82 = vector.broadcast %67 : vector<1x1xf32> to vector<128x1xf32>
    %83 = arith.mulf %81, %82 : vector<128x1xf32>
    %cst_39 = arith.constant 1.000000e+00 : f32
    %84 = vector.broadcast %cst_39 : f32 to vector<128x1xf32>
    %85 = arith.addf %84, %83 : vector<128x1xf32>
    %86 = math.absf %85 : vector<128x1xf32>
    %87 = math.log %86 : vector<128x1xf32>
    %88 = arith.addf %63, %87 : vector<128x1xf32>
    %c3 = arith.constant 3 : index
    %c0_40 = arith.constant 0 : index
    %89 = vector.load %arg6[%c3, %c0_40] : memref<4x8xf32, #tpu.memory_space<vmem>>, vector<1x8xf32>
    %c3_41 = arith.constant 3 : index
    %c0_42 = arith.constant 0 : index
    %90 = vector.load %arg7[%c3_41, %c0_42] : memref<4x8xf32, #tpu.memory_space<vmem>>, vector<1x8xf32>
    %c3_43 = arith.constant 3 : index
    %c0_44 = arith.constant 0 : index
    %91 = vector.load %arg8[%c3_43, %c0_44] : memref<4x1xf32, #tpu.memory_space<vmem>>, vector<1x1xf32>
    %c3_45 = arith.constant 3 : index
    %c0_46 = arith.constant 0 : index
    %92 = vector.load %arg9[%c3_45, %c0_46] : memref<4x1xf32, #tpu.memory_space<vmem>>, vector<1x1xf32>
    %93 = vector.broadcast %89 : vector<1x8xf32> to vector<128x8xf32>
    %94 = arith.mulf %78, %93 : vector<128x8xf32>
    %cst_47 = arith.constant dense<0.000000e+00> : vector<128xf32>
    %95 = vector.multi_reduction <add>, %94, %cst_47 [1] : vector<128x8xf32> to vector<128xf32>
    %96 = vector.shape_cast %95 : vector<128xf32> to vector<128x1xf32>
    %97 = vector.broadcast %91 : vector<1x1xf32> to vector<128x1xf32>
    %98 = arith.addf %96, %97 : vector<128x1xf32>
    %99 = math.tanh %98 : vector<128x1xf32>
    %100 = vector.broadcast %90 : vector<1x8xf32> to vector<128x8xf32>
    %101 = vector.broadcast %99 : vector<128x1xf32> to vector<128x8xf32>
    %102 = arith.mulf %100, %101 : vector<128x8xf32>
    %103 = arith.addf %78, %102 : vector<128x8xf32>
    %104 = arith.mulf %99, %99 : vector<128x1xf32>
    %cst_48 = arith.constant 1.000000e+00 : f32
    %105 = vector.broadcast %cst_48 : f32 to vector<128x1xf32>
    %106 = arith.subf %105, %104 : vector<128x1xf32>
    %107 = vector.broadcast %92 : vector<1x1xf32> to vector<128x1xf32>
    %108 = arith.mulf %106, %107 : vector<128x1xf32>
    %cst_49 = arith.constant 1.000000e+00 : f32
    %109 = vector.broadcast %cst_49 : f32 to vector<128x1xf32>
    %110 = arith.addf %109, %108 : vector<128x1xf32>
    %111 = math.absf %110 : vector<128x1xf32>
    %112 = math.log %111 : vector<128x1xf32>
    %113 = arith.addf %88, %112 : vector<128x1xf32>
    %c0_50 = arith.constant 0 : index
    %c0_51 = arith.constant 0 : index
    %114 = vector.load %arg11[%c0_50, %c0_51] : memref<128x8xf32, #tpu.memory_space<vmem>>, vector<128x8xf32>
    tpu.vector_store %arg11[%c0_50, %c0_51], %103 {strides = array<i32>} : memref<128x8xf32, #tpu.memory_space<vmem>>, vector<128x8xf32>,
    %c0_52 = arith.constant 0 : index
    %c0_53 = arith.constant 0 : index
    %115 = vector.load %arg4[%c0_52, %c0_53] : memref<128x8xf32, #tpu.memory_space<vmem>>, vector<128x8xf32>
    %116 = arith.subf %103, %115 : vector<128x8xf32>
    %cst_54 = arith.constant -5.000000e-01 : f32
    %117 = vector.broadcast %cst_54 : f32 to vector<128x8xf32>
    %118 = arith.mulf %117, %116 : vector<128x8xf32>
    %119 = arith.mulf %118, %116 : vector<128x8xf32>
    %c0_55 = arith.constant 0 : index
    %c0_56 = arith.constant 0 : index
    %120 = vector.load %arg5[%c0_55, %c0_56] : memref<128x8xf32, #tpu.memory_space<vmem>>, vector<128x8xf32>
    %121 = arith.divf %119, %120 : vector<128x8xf32>
    %cst_57 = arith.constant dense<0.000000e+00> : vector<128xf32>
    %122 = vector.multi_reduction <add>, %121, %cst_57 [1] : vector<128x8xf32> to vector<128xf32>
    %123 = vector.shape_cast %122 : vector<128xf32> to vector<128x1xf32>
    %c0_58 = arith.constant 0 : index
    %c0_59 = arith.constant 0 : index
    %124 = vector.load %arg12[%c0_58, %c0_59] : memref<128x3xf32, #tpu.memory_space<vmem>>, vector<128x1xf32>
    tpu.vector_store %arg12[%c0_58, %c0_59], %12 {strides = array<i32>} : memref<128x3xf32, #tpu.memory_space<vmem>>, vector<128x1xf32>,
    %c0_60 = arith.constant 0 : index
    %c1_61 = arith.constant 1 : index
    %125 = vector.load %arg12[%c0_60, %c1_61] : memref<128x3xf32, #tpu.memory_space<vmem>>, vector<128x1xf32>
    tpu.vector_store %arg12[%c0_60, %c1_61], %113 {strides = array<i32>} : memref<128x3xf32, #tpu.memory_space<vmem>>, vector<128x1xf32>,
    %c0_62 = arith.constant 0 : index
    %c2_63 = arith.constant 2 : index
    %126 = vector.load %arg12[%c0_62, %c2_63] : memref<128x3xf32, #tpu.memory_space<vmem>>, vector<128x1xf32>
    tpu.vector_store %arg12[%c0_62, %c2_63], %123 {strides = array<i32>} : memref<128x3xf32, #tpu.memory_space<vmem>>, vector<128x1xf32>,
    return
  }
  func.func @transform_0(%arg0: i32) -> (i32, i32) {
    %c0_i32 = arith.constant 0 : i32
    %c0_i32_0 = arith.constant 0 : i32
    return %arg0, %c0_i32 : i32, i32
  }
  func.func @transform_1(%arg0: i32) -> (i32, i32) {
    %c0_i32 = arith.constant 0 : i32
    %c0_i32_0 = arith.constant 0 : i32
    %c0_i32_1 = arith.constant 0 : i32
    return %c0_i32, %c0_i32_0 : i32, i32
  }
  func.func @transform_2(%arg0: i32) -> (i32, i32) {
    %c0_i32 = arith.constant 0 : i32
    %c0_i32_0 = arith.constant 0 : i32
    %c0_i32_1 = arith.constant 0 : i32
    return %c0_i32, %c0_i32_0 : i32, i32
  }
  func.func @transform_3(%arg0: i32) -> (i32, i32) {
    %c0_i32 = arith.constant 0 : i32
    %c0_i32_0 = arith.constant 0 : i32
    return %arg0, %c0_i32 : i32, i32
  }
  func.func @transform_4(%arg0: i32) -> (i32, i32) {
    %c0_i32 = arith.constant 0 : i32
    %c0_i32_0 = arith.constant 0 : i32
    return %arg0, %c0_i32 : i32, i32
  }
  func.func @transform_5(%arg0: i32) -> (i32, i32) {
    %c0_i32 = arith.constant 0 : i32
    %c0_i32_0 = arith.constant 0 : i32
    %c0_i32_1 = arith.constant 0 : i32
    return %c0_i32, %c0_i32_0 : i32, i32
  }
  func.func @transform_6(%arg0: i32) -> (i32, i32) {
    %c0_i32 = arith.constant 0 : i32
    %c0_i32_0 = arith.constant 0 : i32
    %c0_i32_1 = arith.constant 0 : i32
    return %c0_i32, %c0_i32_0 : i32, i32
  }
  func.func @transform_7(%arg0: i32) -> (i32, i32) {
    %c0_i32 = arith.constant 0 : i32
    %c0_i32_0 = arith.constant 0 : i32
    %c0_i32_1 = arith.constant 0 : i32
    return %c0_i32, %c0_i32_0 : i32, i32
  }
  func.func @transform_8(%arg0: i32) -> (i32, i32) {
    %c0_i32 = arith.constant 0 : i32
    %c0_i32_0 = arith.constant 0 : i32
    %c0_i32_1 = arith.constant 0 : i32
    return %c0_i32, %c0_i32_0 : i32, i32
  }
  func.func @transform_9(%arg0: i32) -> (i32, i32) {
    %c0_i32 = arith.constant 0 : i32
    %c0_i32_0 = arith.constant 0 : i32
    return %arg0, %c0_i32 : i32, i32
  }
  func.func @transform_10(%arg0: i32) -> (i32, i32) {
    %c0_i32 = arith.constant 0 : i32
    %c0_i32_0 = arith.constant 0 : i32
    return %arg0, %c0_i32 : i32, i32
  }
  func.func @transform_11(%arg0: i32) -> (i32, i32) {
    %c0_i32 = arith.constant 0 : i32
    %c0_i32_0 = arith.constant 0 : i32
    return %arg0, %c0_i32 : i32, i32
  }
}

</mosaic_0001>

<llo_original>
// kernel: tpu_custom_call.1
$region0: #{tpu_custom_call.1}
  #allocation0 [shape = 'u32[]', space=smem, size = 0x4, offset = 0x4, fixed_abs, tag = 'smem constant byte address 0x4 - core index']
  #allocation1 [shape = 'u32[72,128]{1,0:T(1,128)}', space=vmem, size = 0x9000, scoped, tag = 'internal scratch']
  %s0 = inlined_call_operand.vmem [shape: f32[256,8], index: 0, kind: input, shape index: {}]
  %s1 = inlined_call_operand.vmem [shape: f32[1,8], index: 1, kind: input, shape index: {}]
  %s2 = inlined_call_operand.vmem [shape: f32[1,8], index: 2, kind: input, shape index: {}]
  %s3 = inlined_call_operand.vmem [shape: f32[256,8], index: 3, kind: input, shape index: {}]
  %s4 = inlined_call_operand.vmem [shape: f32[256,8], index: 4, kind: input, shape index: {}]
  %s5 = inlined_call_operand.vmem [shape: f32[4,8], index: 5, kind: input, shape index: {}]
  %s6 = inlined_call_operand.vmem [shape: f32[4,8], index: 6, kind: input, shape index: {}]
  %s7 = inlined_call_operand.vmem [shape: f32[4,1], index: 7, kind: input, shape index: {}]
  %s8 = inlined_call_operand.vmem [shape: f32[4,1], index: 8, kind: input, shape index: {}]
  %s9 = inlined_call_operand.vmem [shape: f32[256,8], index: 9, kind: output, shape index: {0}]
  %s10 = inlined_call_operand.vmem [shape: f32[256,8], index: 10, kind: output, shape index: {1}]
  %s11 = inlined_call_operand.vmem [shape: f32[256,3], index: 11, kind: output, shape index: {2}]
  %12 = xla_tuple %s9, %s10, %s11
  %s13 = sld [smem:[#allocation0]]
  $region85: #{tpu_custom_call.1} parent=0
    _
  %s15 = ssub.s32 1, %s13
  %s16 = scalar_select 0, %s15, %s13
  loop: start=0, step=1, limit=4
  $region2: #{tpu_custom_call.1} parent=0 // loop_pre_header
    _
  $region3: #{tpu_custom_call.1} parent=0 // loop_header
    %s18 = sphi 0, %s22
    %p19 = scmp.ge.s32.totalorder %s18, 4
    %s28 = sphi 0, %s30
    %s31 = sphi 0, %s28
    %s32 = sphi 0, %s31
    %s48 = sphi 0, %s32
    %s52 = sphi 0, %s52
    %s54 = sphi 0, %s52
    %s55 = sphi 0, %s54
    %s69 = sphi 0, %s55
    %s73 = sphi 0, %s73
    %s75 = sphi 0, %s73
    %s76 = sphi 0, %s75
    %s90 = sphi 0, %s76
    %s96 = sphi 0, %s98
    %s99 = sphi 0, %s96
    %s100 = sphi 0, %s99
    %s116 = sphi 0, %s100
    %s122 = sphi 0, %s124
    %s125 = sphi 0, %s122
    %s126 = sphi 0, %s125
    %s142 = sphi 0, %s126
    %s146 = sphi 0, %s146
    %s148 = sphi 0, %s146
    %s149 = sphi 0, %s148
    %s163 = sphi 0, %s149
    %s167 = sphi 0, %s167
    %s169 = sphi 0, %s167
    %s170 = sphi 0, %s169
    %s184 = sphi 0, %s170
    %s188 = sphi 0, %s188
    %s190 = sphi 0, %s188
    %s191 = sphi 0, %s190
    %s205 = sphi 0, %s191
    %s209 = sphi 0, %s209
    %s211 = sphi 0, %s209
    %s212 = sphi 0, %s211
    %s226 = sphi 0, %s212
    %s232 = sphi 0, %s234
    %s235 = sphi 0, %s232
    %s236 = sphi 0, %s235
    %s252 = sphi 0, %s236
    %s258 = sphi 0, %s260
    %s261 = sphi 0, %s258
    %s262 = sphi 0, %s261
    %s278 = sphi 0, %s262
    %s284 = sphi 0, %s286
    %s287 = sphi 0, %s284
    %s288 = sphi 0, %s287
    %s304 = sphi 0, %s288
  $region4: #{tpu_custom_call.1} parent=0 // loop_header_branch
    %21 = sbr.rel (%p19) target = $region8
  $region5: #{tpu_custom_call.1} parent=0 // loop_body
    %s23 = ssub.s32 %s18, 1
    %s24 = ssub.s32 %s18, 2
    %s25 = sadd.s32 %s18, 1
    %s26 = ssub.s32 %s18, %s25
    %p27 = scmp.eq.s32.totalorder %s26, 0
    %s29 = sadd.s32 %s28, 1
    %s30 = scalar_select %p27, %s28, %s29
    %p33 = pneg %p27
    %p34 = scmp.eq.s32.totalorder %s18, 1
    %p35 = por %p33, %p34
    %p36 = scmp.ne.s32.totalorder %s28, %s31
    %p37 = scmp.eq.s32.totalorder %s18, 0
    %p38 = por %p36, %p37
    %p39 = scmp.ne.s32.totalorder %s28, %s31
    %p40 = scmp.eq.s32.totalorder %s23, 1
    %p41 = por %p39, %p40
    %p42 = scmp.ne.s32.totalorder %s31, %s32
    %p43 = scmp.eq.s32.totalorder %s23, 0
    %p44 = por %p42, %p43
    %p45 = scmp.ne.s32.totalorder %s31, %s32
    %p46 = scmp.eq.s32.totalorder %s24, 1
    %p47 = por %p45, %p46
    %p49 = scmp.ne.s32.totalorder %s32, %s48
    %p50 = scmp.eq.s32.totalorder %s24, 0
    %p51 = por %p49, %p50
    %s53 = sadd.s32 %s52, 1
    %p56 = scmp.eq.s32.totalorder %s18, 1
    %p57 = scmp.ne.s32.totalorder %s52, %s54
    %p58 = scmp.eq.s32.totalorder %s18, 0
    %p59 = por %p57, %p58
    %p60 = scmp.ne.s32.totalorder %s52, %s54
    %p61 = scmp.eq.s32.totalorder %s23, 1
    %p62 = por %p60, %p61
    %p63 = scmp.ne.s32.totalorder %s54, %s55
    %p64 = scmp.eq.s32.totalorder %s23, 0
    %p65 = por %p63, %p64
    %p66 = scmp.ne.s32.totalorder %s54, %s55
    %p67 = scmp.eq.s32.totalorder %s24, 1
    %p68 = por %p66, %p67
    %p70 = scmp.ne.s32.totalorder %s55, %s69
    %p71 = scmp.eq.s32.totalorder %s24, 0
    %p72 = por %p70, %p71
    %s74 = sadd.s32 %s73, 1
    %p77 = scmp.eq.s32.totalorder %s18, 1
    %p78 = scmp.ne.s32.totalorder %s73, %s75
    %p79 = scmp.eq.s32.totalorder %s18, 0
    %p80 = por %p78, %p79
    %p81 = scmp.ne.s32.totalorder %s73, %s75
    %p82 = scmp.eq.s32.totalorder %s23, 1
    %p83 = por %p81, %p82
    %p84 = scmp.ne.s32.totalorder %s75, %s76
    %p85 = scmp.eq.s32.totalorder %s23, 0
    %p86 = por %p84, %p85
    %p87 = scmp.ne.s32.totalorder %s75, %s76
    %p88 = scmp.eq.s32.totalorder %s24, 1
    %p89 = por %p87, %p88
    %p91 = scmp.ne.s32.totalorder %s76, %s90
    %p92 = scmp.eq.s32.totalorder %s24, 0
    %p93 = por %p91, %p92
    %s94 = ssub.s32 %s18, %s25
    %p95 = scmp.eq.s32.totalorder %s94, 0
    %s97 = sadd.s32 %s96, 1
    %s98 = scalar_select %p95, %s96, %s97
    %p101 = pneg %p95
    %p102 = scmp.eq.s32.totalorder %s18, 1
    %p103 = por %p101, %p102
    %p104 = scmp.ne.s32.totalorder %s96, %s99
    %p105 = scmp.eq.s32.totalorder %s18, 0
    %p106 = por %p104, %p105
    %p107 = scmp.ne.s32.totalorder %s96, %s99
    %p108 = scmp.eq.s32.totalorder %s23, 1
    %p109 = por %p107, %p108
    %p110 = scmp.ne.s32.totalorder %s99, %s100
    %p111 = scmp.eq.s32.totalorder %s23, 0
    %p112 = por %p110, %p111
    %p113 = scmp.ne.s32.totalorder %s99, %s100
    %p114 = scmp.eq.s32.totalorder %s24, 1
    %p115 = por %p113, %p114
    %p117 = scmp.ne.s32.totalorder %s100, %s116
    %p118 = scmp.eq.s32.totalorder %s24, 0
    %p119 = por %p117, %p118
    %s120 = ssub.s32 %s18, %s25
    %p121 = scmp.eq.s32.totalorder %s120, 0
    %s123 = sadd.s32 %s122, 1
    %s124 = scalar_select %p121, %s122, %s123
    %p127 = pneg %p121
    %p128 = scmp.eq.s32.totalorder %s18, 1
    %p129 = por %p127, %p128
    %p130 = scmp.ne.s32.totalorder %s122, %s125
    %p131 = scmp.eq.s32.totalorder %s18, 0
    %p132 = por %p130, %p131
    %p133 = scmp.ne.s32.totalorder %s122, %s125
    %p134 = scmp.eq.s32.totalorder %s23, 1
    %p135 = por %p133, %p134
    %p136 = scmp.ne.s32.totalorder %s125, %s126
    %p137 = scmp.eq.s32.totalorder %s23, 0
    %p138 = por %p136, %p137
    %p139 = scmp.ne.s32.totalorder %s125, %s126
    %p140 = scmp.eq.s32.totalorder %s24, 1
    %p141 = por %p139, %p140
    %p143 = scmp.ne.s32.totalorder %s126, %s142
    %p144 = scmp.eq.s32.totalorder %s24, 0
    %p145 = por %p143, %p144
    %s147 = sadd.s32 %s146, 1
    %p150 = scmp.eq.s32.totalorder %s18, 1
    %p151 = scmp.ne.s32.totalorder %s146, %s148
    %p152 = scmp.eq.s32.totalorder %s18, 0
    %p153 = por %p151, %p152
    %p154 = scmp.ne.s32.totalorder %s146, %s148
    %p155 = scmp.eq.s32.totalorder %s23, 1
    %p156 = por %p154, %p155
    %p157 = scmp.ne.s32.totalorder %s148, %s149
    %p158 = scmp.eq.s32.totalorder %s23, 0
    %p159 = por %p157, %p158
    %p160 = scmp.ne.s32.totalorder %s148, %s149
    %p161 = scmp.eq.s32.totalorder %s24, 1
    %p162 = por %p160, %p161
    %p164 = scmp.ne.s32.totalorder %s149, %s163
    %p165 = scmp.eq.s32.totalorder %s24, 0
    %p166 = por %p164, %p165
    %s168 = sadd.s32 %s167, 1
    %p171 = scmp.eq.s32.totalorder %s18, 1
    %p172 = scmp.ne.s32.totalorder %s167, %s169
    %p173 = scmp.eq.s32.totalorder %s18, 0
    %p174 = por %p172, %p173
    %p175 = scmp.ne.s32.totalorder %s167, %s169
    %p176 = scmp.eq.s32.totalorder %s23, 1
    %p177 = por %p175, %p176
    %p178 = scmp.ne.s32.totalorder %s169, %s170
    %p179 = scmp.eq.s32.totalorder %s23, 0
    %p180 = por %p178, %p179
    %p181 = scmp.ne.s32.totalorder %s169, %s170
    %p182 = scmp.eq.s32.totalorder %s24, 1
    %p183 = por %p181, %p182
    %p185 = scmp.ne.s32.totalorder %s170, %s184
    %p186 = scmp.eq.s32.totalorder %s24, 0
    %p187 = por %p185, %p186
    %s189 = sadd.s32 %s188, 1
    %p192 = scmp.eq.s32.totalorder %s18, 1
    %p193 = scmp.ne.s32.totalorder %s188, %s190
    %p194 = scmp.eq.s32.totalorder %s18, 0
    %p195 = por %p193, %p194
    %p196 = scmp.ne.s32.totalorder %s188, %s190
    %p197 = scmp.eq.s32.totalorder %s23, 1
    %p198 = por %p196, %p197
    %p199 = scmp.ne.s32.totalorder %s190, %s191
    %p200 = scmp.eq.s32.totalorder %s23, 0
    %p201 = por %p199, %p200
    %p202 = scmp.ne.s32.totalorder %s190, %s191
    %p203 = scmp.eq.s32.totalorder %s24, 1
    %p204 = por %p202, %p203
    %p206 = scmp.ne.s32.totalorder %s191, %s205
    %p207 = scmp.eq.s32.totalorder %s24, 0
    %p208 = por %p206, %p207
    %s210 = sadd.s32 %s209, 1
    %p213 = scmp.eq.s32.totalorder %s18, 1
    %p214 = scmp.ne.s32.totalorder %s209, %s211
    %p215 = scmp.eq.s32.totalorder %s18, 0
    %p216 = por %p214, %p215
    %p217 = scmp.ne.s32.totalorder %s209, %s211
    %p218 = scmp.eq.s32.totalorder %s23, 1
    %p219 = por %p217, %p218
    %p220 = scmp.ne.s32.totalorder %s211, %s212
    %p221 = scmp.eq.s32.totalorder %s23, 0
    %p222 = por %p220, %p221
    %p223 = scmp.ne.s32.totalorder %s211, %s212
    %p224 = scmp.eq.s32.totalorder %s24, 1
    %p225 = por %p223, %p224
    %p227 = scmp.ne.s32.totalorder %s212, %s226
    %p228 = scmp.eq.s32.totalorder %s24, 0
    %p229 = por %p227, %p228
    %s230 = ssub.s32 %s18, %s25
    %p231 = scmp.eq.s32.totalorder %s230, 0
    %s233 = sadd.s32 %s232, 1
    %s234 = scalar_select %p231, %s232, %s233
    %p237 = pneg %p231
    %p238 = scmp.eq.s32.totalorder %s18, 1
    %p239 = por %p237, %p238
    %p240 = scmp.ne.s32.totalorder %s232, %s235
    %p241 = scmp.eq.s32.totalorder %s18, 0
    %p242 = por %p240, %p241
    %p243 = scmp.ne.s32.totalorder %s232, %s235
    %p244 = scmp.eq.s32.totalorder %s23, 1
    %p245 = por %p243, %p244
    %p246 = scmp.ne.s32.totalorder %s235, %s236
    %p247 = scmp.eq.s32.totalorder %s23, 0
    %p248 = por %p246, %p247
    %p249 = scmp.ne.s32.totalorder %s235, %s236
    %p250 = scmp.eq.s32.totalorder %s24, 1
    %p251 = por %p249, %p250
    %p253 = scmp.ne.s32.totalorder %s236, %s252
    %p254 = scmp.eq.s32.totalorder %s24, 0
    %p255 = por %p253, %p254
    %s256 = ssub.s32 %s18, %s25
    %p257 = scmp.eq.s32.totalorder %s256, 0
    %s259 = sadd.s32 %s258, 1
    %s260 = scalar_select %p257, %s258, %s259
    %p263 = pneg %p257
    %p264 = scmp.eq.s32.totalorder %s18, 1
    %p265 = por %p263, %p264
    %p266 = scmp.ne.s32.totalorder %s258, %s261
    %p267 = scmp.eq.s32.totalorder %s18, 0
    %p268 = por %p266, %p267
    %p269 = scmp.ne.s32.totalorder %s258, %s261
    %p270 = scmp.eq.s32.totalorder %s23, 1
    %p271 = por %p269, %p270
    %p272 = scmp.ne.s32.totalorder %s261, %s262
    %p273 = scmp.eq.s32.totalorder %s23, 0
    %p274 = por %p272, %p273
    %p275 = scmp.ne.s32.totalorder %s261, %s262
    %p276 = scmp.eq.s32.totalorder %s24, 1
    %p277 = por %p275, %p276
    %p279 = scmp.ne.s32.totalorder %s262, %s278
    %p280 = scmp.eq.s32.totalorder %s24, 0
    %p281 = por %p279, %p280
    %s282 = ssub.s32 %s18, %s25
    %p283 = scmp.eq.s32.totalorder %s282, 0
    %s285 = sadd.s32 %s284, 1
    %s286 = scalar_select %p283, %s284, %s285
    %p289 = pneg %p283
    %p290 = scmp.eq.s32.totalorder %s18, 1
    %p291 = por %p289, %p290
    %p292 = scmp.ne.s32.totalorder %s284, %s287
    %p293 = scmp.eq.s32.totalorder %s18, 0
    %p294 = por %p292, %p293
    %p295 = scmp.ne.s32.totalorder %s284, %s287
    %p296 = scmp.eq.s32.totalorder %s23, 1
    %p297 = por %p295, %p296
    %p298 = scmp.ne.s32.totalorder %s287, %s288
    %p299 = scmp.eq.s32.totalorder %s23, 0
    %p300 = por %p298, %p299
    %p301 = scmp.ne.s32.totalorder %s287, %s288
    %p302 = scmp.eq.s32.totalorder %s24, 1
    %p303 = por %p301, %p302
    %p305 = scmp.ne.s32.totalorder %s288, %s304
    %p306 = scmp.eq.s32.totalorder %s24, 0
    %p307 = por %p305, %p306
    %p308 = scmp.le.s32.totalorder 1, %s18
    %p309 = scmp.lt.s32.totalorder %s18, 3
    %p310 = pnand %p308, %p309
    %p311 = pneg %p310
    // Predicated region
    $region9: #{tpu_custom_call.1} parent=5 // pred_check
      _
    $region10: #{tpu_custom_call.1} parent=5 // pred_check_branch
      %313 = sbr.rel (%p310) target = $region12
    $region11: #{tpu_custom_call.1} parent=5 // pred_region
      %s314 = ssub.s32 %s18, 1
      // Predicated region
      $region13: #{tpu_custom_call.1} parent=11 // pred_check
        %p315 = pneg %p65
      $region14: #{tpu_custom_call.1} parent=11 // pred_check_branch
        %317 = sbr.rel (%p315) target = $region16
      $region15: #{tpu_custom_call.1} parent=11 // pred_region
        _
      $region16: #{tpu_custom_call.1} parent=11 // pred_fallthru
        _
      // Predicated region
      $region17: #{tpu_custom_call.1} parent=11 // pred_check
        %p318 = pneg %p86
      $region18: #{tpu_custom_call.1} parent=11 // pred_check_branch
        %320 = sbr.rel (%p318) target = $region20
      $region19: #{tpu_custom_call.1} parent=11 // pred_region
        _
      $region20: #{tpu_custom_call.1} parent=11 // pred_fallthru
        _
      // Predicated region
      $region21: #{tpu_custom_call.1} parent=11 // pred_check
        %p321 = pneg %p159
      $region22: #{tpu_custom_call.1} parent=11 // pred_check_branch
        %323 = sbr.rel (%p321) target = $region24
      $region23: #{tpu_custom_call.1} parent=11 // pred_region
        _
      $region24: #{tpu_custom_call.1} parent=11 // pred_fallthru
        _
      // Predicated region
      $region25: #{tpu_custom_call.1} parent=11 // pred_check
        %p324 = pneg %p180
      $region26: #{tpu_custom_call.1} parent=11 // pred_check_branch
        %326 = sbr.rel (%p324) target = $region28
      $region27: #{tpu_custom_call.1} parent=11 // pred_region
        _
      $region28: #{tpu_custom_call.1} parent=11 // pred_fallthru
        _
      // Predicated region
      $region29: #{tpu_custom_call.1} parent=11 // pred_check
        %p327 = pneg %p201
      $region30: #{tpu_custom_call.1} parent=11 // pred_check_branch
        %329 = sbr.rel (%p327) target = $region32
      $region31: #{tpu_custom_call.1} parent=11 // pred_region
        _
      $region32: #{tpu_custom_call.1} parent=11 // pred_fallthru
        _
      // Predicated region
      $region33: #{tpu_custom_call.1} parent=11 // pred_check
        %p330 = pneg %p222
      $region34: #{tpu_custom_call.1} parent=11 // pred_check_branch
        %332 = sbr.rel (%p330) target = $region36
      $region35: #{tpu_custom_call.1} parent=11 // pred_region
        _
      $region36: #{tpu_custom_call.1} parent=11 // pred_fallthru
        _
    $region12: #{tpu_custom_call.1} parent=5 // pred_fallthru
      _
    %p333 = scmp.lt.s32.totalorder %s18, 2
    // Predicated region
    $region37: #{tpu_custom_call.1} parent=5 // pred_check
      %p334 = pneg %p333
    $region38: #{tpu_custom_call.1} parent=5 // pred_check_branch
      %336 = sbr.rel (%p334) target = $region40
    $region39: #{tpu_custom_call.1} parent=5 // pred_region
      // Predicated region
      $region41: #{tpu_custom_call.1} parent=39 // pred_check
        %p337 = pneg %p38
      $region42: #{tpu_custom_call.1} parent=39 // pred_check_branch
        %339 = sbr.rel (%p337) target = $region44
      $region43: #{tpu_custom_call.1} parent=39 // pred_region
        %s340 = smul.u32 16, %s18
        %p341 = scmp.lt.s32.totalorder %s340, 31
        %s342 = scalar_select %p341, %s340, 31
        %s343 = smul.addr %s342, 8
        %s344 = scalar_lea.vmem %s0, %s343
        %s345 = smul.u32 16, %s18
      $region44: #{tpu_custom_call.1} parent=39 // pred_fallthru
        _
      // Predicated region
      $region45: #{tpu_custom_call.1} parent=39 // pred_check
        %p346 = pneg %p106
      $region46: #{tpu_custom_call.1} parent=39 // pred_check_branch
        %348 = sbr.rel (%p346) target = $region48
      $region47: #{tpu_custom_call.1} parent=39 // pred_region
        %s349 = smul.u32 16, %s18
        %p350 = scmp.lt.s32.totalorder %s349, 31
        %s351 = scalar_select %p350, %s349, 31
        %s352 = smul.addr %s351, 8
        %s353 = scalar_lea.vmem %s3, %s352
        %s354 = smul.u32 16, %s18
      $region48: #{tpu_custom_call.1} parent=39 // pred_fallthru
        _
      // Predicated region
      $region49: #{tpu_custom_call.1} parent=39 // pred_check
        %p355 = pneg %p132
      $region50: #{tpu_custom_call.1} parent=39 // pred_check_branch
        %357 = sbr.rel (%p355) target = $region52
      $region51: #{tpu_custom_call.1} parent=39 // pred_region
        %s358 = smul.u32 16, %s18
        %p359 = scmp.lt.s32.totalorder %s358, 31
        %s360 = scalar_select %p359, %s358, 31
        %s361 = smul.addr %s360, 8
        %s362 = scalar_lea.vmem %s4, %s361
        %s363 = smul.u32 16, %s18
      $region52: #{tpu_custom_call.1} parent=39 // pred_fallthru
        _
    $region40: #{tpu_custom_call.1} parent=5 // pred_fallthru
      _
    %p364 = scmp.le.s32.totalorder 1, %s18
    %p365 = scmp.lt.s32.totalorder %s18, 3
    %p366 = pnand %p364, %p365
    %p367 = pneg %p366
    // Predicated region
    $region53: #{tpu_custom_call.1} parent=5 // pred_check
      _
    $region54: #{tpu_custom_call.1} parent=5 // pred_check_branch
      %369 = sbr.rel (%p366) target = $region56
    $region55: #{tpu_custom_call.1} parent=5 // pred_region
      %s370 = ssub.s32 %s18, 1
      %s371 = smul.u32 16, %s23
      %p372 = scmp.lt.s32.totalorder %s371, 31
      %s373 = scalar_select %p372, %s371, 31
      %s374 = smul.addr %s373, 8
      %s375 = scalar_lea.vmem %s0, %s374
      %p376 = pneg %p44
      %p377 = pneg %p41
      %p378 = pneg %p65
      %p379 = pneg %p62
      %p380 = pneg %p86
      %p381 = pneg %p83
      %s382 = smul.u32 16, %s23
      %p383 = scmp.lt.s32.totalorder %s382, 31
      %s384 = scalar_select %p383, %s382, 31
      %s385 = smul.addr %s384, 8
      %s386 = scalar_lea.vmem %s3, %s385
      %p387 = pneg %p112
      %p388 = pneg %p109
      %s389 = smul.u32 16, %s23
      %p390 = scmp.lt.s32.totalorder %s389, 31
      %s391 = scalar_select %p390, %s389, 31
      %s392 = smul.addr %s391, 8
      %s393 = scalar_lea.vmem %s4, %s392
      %p394 = pneg %p138
      %p395 = pneg %p135
      %p396 = pneg %p159
      %p397 = pneg %p156
      %p398 = pneg %p180
      %p399 = pneg %p177
      %p400 = pneg %p201
      %p401 = pneg %p198
      %p402 = pneg %p222
      %p403 = pneg %p219
      %p404 = pneg %p248
      %p405 = pneg %p245
      %s406 = smul.u32 16, %s23
      %p407 = scmp.lt.s32.totalorder %s406, 31
      %s408 = scalar_select %p407, %s406, 31
      %s409 = smul.addr %s408, 8
      %s410 = scalar_lea.vmem %s9, %s409
      %p411 = pneg %p274
      %p412 = pneg %p271
      %s413 = smul.u32 16, %s23
      %p414 = scmp.lt.s32.totalorder %s413, 31
      %s415 = scalar_select %p414, %s413, 31
      %s416 = smul.addr %s415, 8
      %s417 = scalar_lea.vmem %s10, %s416
      %p418 = pneg %p300
      %p419 = pneg %p297
      %s420 = smul.u32 16, %s23
      %p421 = scmp.lt.s32.totalorder %s420, 31
      %s422 = scalar_select %p421, %s420, 31
      %s423 = smul.addr %s422, 8
      %s424 = scalar_lea.vmem %s11, %s423
      %s425 = smul.u32 16, %s23
      %p426 = scmp.lt.s32.totalorder %s425, 31
      %s427 = scalar_select %p426, %s425, 31
      %s428 = smul.addr %s427, 8
      %s429 = scalar_lea.vmem %s0, %s428
      %s430 = smul.u32 16, %s23
      %s431 = smul.u32 16, %s23
      %p432 = scmp.lt.s32.totalorder %s431, 31
      %s433 = scalar_select %p432, %s431, 31
      %s434 = smul.addr %s433, 8
      %s435 = scalar_lea.vmem %s3, %s434
      %s436 = smul.u32 16, %s23
      %s437 = smul.u32 16, %s23
      %p438 = scmp.lt.s32.totalorder %s437, 31
      %s439 = scalar_select %p438, %s437, 31
      %s440 = smul.addr %s439, 8
      %s441 = scalar_lea.vmem %s4, %s440
      %s442 = smul.u32 16, %s23
      %s443 = smul.u32 16, %s23
      %p444 = scmp.lt.s32.totalorder %s443, 31
      %s445 = scalar_select %p444, %s443, 31
      %s446 = smul.addr %s445, 8
      %s447 = scalar_lea.vmem %s9, %s446
      %s448 = smul.u32 16, %s23
      %s449 = smul.u32 16, %s23
      %p450 = scmp.lt.s32.totalorder %s449, 31
      %s451 = scalar_select %p450, %s449, 31
      %s452 = smul.addr %s451, 8
      %s453 = scalar_lea.vmem %s10, %s452
      %s454 = smul.u32 16, %s23
      %s455 = smul.u32 16, %s23
      %p456 = scmp.lt.s32.totalorder %s455, 31
      %s457 = scalar_select %p456, %s455, 31
      %s458 = smul.addr %s457, 8
      %s459 = scalar_lea.vmem %s11, %s458
      %s460 = smul.u32 16, %s23
      %v461 = vld [vmem:[%s429] sm:$0xff]
      %v462 = vld [vmem:[%s429 + $0x8] sm:$0xff]
      %v463 = vld [vmem:[%s429 + $0x10] sm:$0xff]
      %v464 = vld [vmem:[%s429 + $0x18] sm:$0xff]
      %v465 = vld [vmem:[%s429 + $0x20] sm:$0xff]
      %v466 = vld [vmem:[%s429 + $0x28] sm:$0xff]
      %v467 = vld [vmem:[%s429 + $0x30] sm:$0xff]
      %v468 = vld [vmem:[%s429 + $0x38] sm:$0xff]
      %v469 = vld [vmem:[%s429 + $0x40] sm:$0xff]
      %v470 = vld [vmem:[%s429 + $0x48] sm:$0xff]
      %v471 = vld [vmem:[%s429 + $0x50] sm:$0xff]
      %v472 = vld [vmem:[%s429 + $0x58] sm:$0xff]
      %v473 = vld [vmem:[%s429 + $0x60] sm:$0xff]
      %v474 = vld [vmem:[%s429 + $0x68] sm:$0xff]
      %v475 = vld [vmem:[%s429 + $0x70] sm:$0xff]
      %v476 = vld [vmem:[%s429 + $0x78] sm:$0xff]
      %v477 = vld [vmem:[%s1] sm:$0x1]
      %v478 = vld [vmem:[%s2] sm:$0x1]
      %v480 = vperm.slane %v478, 0
      %v482 = vmul.f32 %v480, %v461
      %v483 = vmul.f32 %v480, %v462
      %v484 = vmul.f32 %v480, %v463
      %v485 = vmul.f32 %v480, %v464
      %v486 = vmul.f32 %v480, %v465
      %v487 = vmul.f32 %v480, %v466
      %v488 = vmul.f32 %v480, %v467
      %v489 = vmul.f32 %v480, %v468
      %v490 = vmul.f32 %v480, %v469
      %v491 = vmul.f32 %v480, %v470
      %v492 = vmul.f32 %v480, %v471
      %v493 = vmul.f32 %v480, %v472
      %v494 = vmul.f32 %v480, %v473
      %v495 = vmul.f32 %v480, %v474
      %v496 = vmul.f32 %v480, %v475
      %v497 = vmul.f32 %v480, %v476
      %v499 = vperm.slane %v477, 0
      %v501 = vadd.f32 %v499, %v482
      %v502 = vadd.f32 %v499, %v483
      %v503 = vadd.f32 %v499, %v484
      %v504 = vadd.f32 %v499, %v485
      %v505 = vadd.f32 %v499, %v486
      %v506 = vadd.f32 %v499, %v487
      %v507 = vadd.f32 %v499, %v488
      %v508 = vadd.f32 %v499, %v489
      %v509 = vadd.f32 %v499, %v490
      %v510 = vadd.f32 %v499, %v491
      %v511 = vadd.f32 %v499, %v492
      %v512 = vadd.f32 %v499, %v493
      %v513 = vadd.f32 %v499, %v494
      %v514 = vadd.f32 %v499, %v495
      %v515 = vadd.f32 %v499, %v496
      %v516 = vadd.f32 %v499, %v497
      %vm517 = vcmask 64512
      %518 = vst.msk [vmem:[%s447] sm:$0xff] %vm517, %v501
      %519 = vst.msk [vmem:[%s447 + $0x8] sm:$0xff] %vm517, %v502
      %520 = vst.msk [vmem:[%s447 + $0x10] sm:$0xff] %vm517, %v503
      %521 = vst.msk [vmem:[%s447 + $0x18] sm:$0xff] %vm517, %v504
      %522 = vst.msk [vmem:[%s447 + $0x20] sm:$0xff] %vm517, %v505
      %523 = vst.msk [vmem:[%s447 + $0x28] sm:$0xff] %vm517, %v506
      %524 = vst.msk [vmem:[%s447 + $0x30] sm:$0xff] %vm517, %v507
      %525 = vst.msk [vmem:[%s447 + $0x38] sm:$0xff] %vm517, %v508
      %526 = vst.msk [vmem:[%s447 + $0x40] sm:$0xff] %vm517, %v509
      %527 = vst.msk [vmem:[%s447 + $0x48] sm:$0xff] %vm517, %v510
      %528 = vst.msk [vmem:[%s447 + $0x50] sm:$0xff] %vm517, %v511
      %529 = vst.msk [vmem:[%s447 + $0x58] sm:$0xff] %vm517, %v512
      %530 = vst.msk [vmem:[%s447 + $0x60] sm:$0xff] %vm517, %v513
      %531 = vst.msk [vmem:[%s447 + $0x68] sm:$0xff] %vm517, %v514
      %532 = vst.msk [vmem:[%s447 + $0x70] sm:$0xff] %vm517, %v515
      %533 = vst.msk [vmem:[%s447 + $0x78] sm:$0xff] %vm517, %v516
      %v534 = vmul.f32 %v461, %v461
      %v535 = vmul.f32 %v462, %v462
      %v536 = vmul.f32 %v463, %v463
      %v537 = vmul.f32 %v464, %v464
      %v538 = vmul.f32 %v465, %v465
      %v539 = vmul.f32 %v466, %v466
      %v540 = vmul.f32 %v467, %v467
      %v541 = vmul.f32 %v468, %v468
      %v542 = vmul.f32 %v469, %v469
      %v543 = vmul.f32 %v470, %v470
      %v544 = vmul.f32 %v471, %v471
      %v545 = vmul.f32 %v472, %v472
      %v546 = vmul.f32 %v473, %v473
      %v547 = vmul.f32 %v474, %v474
      %v548 = vmul.f32 %v475, %v475
      %v549 = vmul.f32 %v476, %v476
      %v550 = vsel %vm517, %v534, 0.0
      %551 = vadd.xlane.f32.xlu0 %v550
      %v552 = vpop.xlane.xlu0 %551
      %v553 = vsel %vm517, %v535, 0.0
      %554 = vadd.xlane.f32.xlu0 %v553
      %v555 = vpop.xlane.xlu0 %554
      %v556 = vsel %vm517, %v536, 0.0
      %557 = vadd.xlane.f32.xlu0 %v556
      %v558 = vpop.xlane.xlu0 %557
      %v559 = vsel %vm517, %v537, 0.0
      %560 = vadd.xlane.f32.xlu0 %v559
      %v561 = vpop.xlane.xlu0 %560
      %v562 = vsel %vm517, %v538, 0.0
      %563 = vadd.xlane.f32.xlu0 %v562
      %v564 = vpop.xlane.xlu0 %563
      %v565 = vsel %vm517, %v539, 0.0
      %566 = vadd.xlane.f32.xlu0 %v565
      %v567 = vpop.xlane.xlu0 %566
      %v568 = vsel %vm517, %v540, 0.0
      %569 = vadd.xlane.f32.xlu0 %v568
      %v570 = vpop.xlane.xlu0 %569
      %v571 = vsel %vm517, %v541, 0.0
      %572 = vadd.xlane.f32.xlu0 %v571
      %v573 = vpop.xlane.xlu0 %572
      %v574 = vsel %vm517, %v542, 0.0
      %575 = vadd.xlane.f32.xlu0 %v574
      %v576 = vpop.xlane.xlu0 %575
      %v577 = vsel %vm517, %v543, 0.0
      %578 = vadd.xlane.f32.xlu0 %v577
      %v579 = vpop.xlane.xlu0 %578
      %v580 = vsel %vm517, %v544, 0.0
      %581 = vadd.xlane.f32.xlu0 %v580
      %v582 = vpop.xlane.xlu0 %581
      %v583 = vsel %vm517, %v545, 0.0
      %584 = vadd.xlane.f32.xlu0 %v583
      %v585 = vpop.xlane.xlu0 %584
      %v586 = vsel %vm517, %v546, 0.0
      %587 = vadd.xlane.f32.xlu0 %v586
      %v588 = vpop.xlane.xlu0 %587
      %v589 = vsel %vm517, %v547, 0.0
      %590 = vadd.xlane.f32.xlu0 %v589
      %v591 = vpop.xlane.xlu0 %590
      %v592 = vsel %vm517, %v548, 0.0
      %593 = vadd.xlane.f32.xlu0 %v592
      %v594 = vpop.xlane.xlu0 %593
      %v595 = vsel %vm517, %v549, 0.0
      %596 = vadd.xlane.f32.xlu0 %v595
      %v597 = vpop.xlane.xlu0 %596
      %v598 = vmul.f32 %v552, -0.5
      %v599 = vmul.f32 %v555, -0.5
      %v600 = vmul.f32 %v558, -0.5
      %v601 = vmul.f32 %v561, -0.5
      %v602 = vmul.f32 %v564, -0.5
      %v603 = vmul.f32 %v567, -0.5
      %v604 = vmul.f32 %v570, -0.5
      %v605 = vmul.f32 %v573, -0.5
      %v606 = vmul.f32 %v576, -0.5
      %v607 = vmul.f32 %v579, -0.5
      %v608 = vmul.f32 %v582, -0.5
      %v609 = vmul.f32 %v585, -0.5
      %v610 = vmul.f32 %v588, -0.5
      %v611 = vmul.f32 %v591, -0.5
      %v612 = vmul.f32 %v594, -0.5
      %v613 = vmul.f32 %v597, -0.5
      %v614 = vld [vmem:[%s5] sm:$0x1]
      %v615 = vld [vmem:[%s6] sm:$0x1]
      %v616 = vld [vmem:[%s7] sm:$0x1]
      %v617 = vld [vmem:[%s8] sm:$0x1]
      %v618 = vperm.slane %v614, 0
      %v619 = vmul.f32 %v501, %v618
      %v620 = vmul.f32 %v502, %v618
      %v621 = vmul.f32 %v503, %v618
      %v622 = vmul.f32 %v504, %v618
      %v623 = vmul.f32 %v505, %v618
      %v624 = vmul.f32 %v506, %v618
      %v625 = vmul.f32 %v507, %v618
      %v626 = vmul.f32 %v508, %v618
      %v627 = vmul.f32 %v509, %v618
      %v628 = vmul.f32 %v510, %v618
      %v629 = vmul.f32 %v511, %v618
      %v630 = vmul.f32 %v512, %v618
      %v631 = vmul.f32 %v513, %v618
      %v632 = vmul.f32 %v514, %v618
      %v633 = vmul.f32 %v515, %v618
      %v634 = vmul.f32 %v516, %v618
      %v635 = vsel %vm517, %v619, 0.0
      %636 = vadd.xlane.f32.xlu0 %v635
      %v637 = vpop.xlane.xlu0 %636
      %v638 = vsel %vm517, %v620, 0.0
      %639 = vadd.xlane.f32.xlu0 %v638
      %v640 = vpop.xlane.xlu0 %639
      %v641 = vsel %vm517, %v621, 0.0
      %642 = vadd.xlane.f32.xlu0 %v641
      %v643 = vpop.xlane.xlu0 %642
      %v644 = vsel %vm517, %v622, 0.0
      %645 = vadd.xlane.f32.xlu0 %v644
      %v646 = vpop.xlane.xlu0 %645
      %v647 = vsel %vm517, %v623, 0.0
      %648 = vadd.xlane.f32.xlu0 %v647
      %v649 = vpop.xlane.xlu0 %648
      %v650 = vsel %vm517, %v624, 0.0
      %651 = vadd.xlane.f32.xlu0 %v650
      %v652 = vpop.xlane.xlu0 %651
      %v653 = vsel %vm517, %v625, 0.0
      %654 = vadd.xlane.f32.xlu0 %v653
      %v655 = vpop.xlane.xlu0 %654
      %v656 = vsel %vm517, %v626, 0.0
      %657 = vadd.xlane.f32.xlu0 %v656
      %v658 = vpop.xlane.xlu0 %657
      %v659 = vsel %vm517, %v627, 0.0
      %660 = vadd.xlane.f32.xlu0 %v659
      %v661 = vpop.xlane.xlu0 %660
      %v662 = vsel %vm517, %v628, 0.0
      %663 = vadd.xlane.f32.xlu0 %v662
      %v664 = vpop.xlane.xlu0 %663
      %v665 = vsel %vm517, %v629, 0.0
      %666 = vadd.xlane.f32.xlu0 %v665
      %v667 = vpop.xlane.xlu0 %666
      %v668 = vsel %vm517, %v630, 0.0
      %669 = vadd.xlane.f32.xlu0 %v668
      %v670 = vpop.xlane.xlu0 %669
      %v671 = vsel %vm517, %v631, 0.0
      %672 = vadd.xlane.f32.xlu0 %v671
      %v673 = vpop.xlane.xlu0 %672
      %v674 = vsel %vm517, %v632, 0.0
      %675 = vadd.xlane.f32.xlu0 %v674
      %v676 = vpop.xlane.xlu0 %675
      %v677 = vsel %vm517, %v633, 0.0
      %678 = vadd.xlane.f32.xlu0 %v677
      %v679 = vpop.xlane.xlu0 %678
      %v680 = vsel %vm517, %v634, 0.0
      %681 = vadd.xlane.f32.xlu0 %v680
      %v682 = vpop.xlane.xlu0 %681
      %v683 = vperm.slane %v616, 0
      %v684 = vadd.f32 %v637, %v683
      %v685 = vadd.f32 %v640, %v683
      %v686 = vadd.f32 %v643, %v683
      %v687 = vadd.f32 %v646, %v683
      %v688 = vadd.f32 %v649, %v683
      %v689 = vadd.f32 %v652, %v683
      %v690 = vadd.f32 %v655, %v683
      %v691 = vadd.f32 %v658, %v683
      %v692 = vadd.f32 %v661, %v683
      %v693 = vadd.f32 %v664, %v683
      %v694 = vadd.f32 %v667, %v683
      %v695 = vadd.f32 %v670, %v683
      %v696 = vadd.f32 %v673, %v683
      %v697 = vadd.f32 %v676, %v683
      %v698 = vadd.f32 %v679, %v683
      %v699 = vadd.f32 %v682, %v683
      %v700 = vtanh.pop %v684
      %v701 = vtanh.pop %v685
      %v702 = vtanh.pop %v686
      %v703 = vtanh.pop %v687
      %v704 = vtanh.pop %v688
      %v705 = vtanh.pop %v689
      %v706 = vtanh.pop %v690
      %v707 = vtanh.pop %v691
      %v708 = vtanh.pop %v692
      %v709 = vtanh.pop %v693
      %v710 = vtanh.pop %v694
      %v711 = vtanh.pop %v695
      %v712 = vtanh.pop %v696
      %v713 = vtanh.pop %v697
      %v714 = vtanh.pop %v698
      %v715 = vtanh.pop %v699
      %v716 = vperm.slane %v615, 0
      %718 = vset.pattern.permute.xlu0 0
      %719 = vperm.xlu0 %718, %v700
      %v720 = vpop.permute.xlu0 %719
      %723 = vset.pattern.permute.xlu0 0
      %724 = vperm.xlu0 %723, %v701
      %v725 = vpop.permute.xlu0 %724
      %728 = vset.pattern.permute.xlu0 0
      %729 = vperm.xlu0 %728, %v702
      %v730 = vpop.permute.xlu0 %729
      %733 = vset.pattern.permute.xlu0 0
      %734 = vperm.xlu0 %733, %v703
      %v735 = vpop.permute.xlu0 %734
      %738 = vset.pattern.permute.xlu0 0
      %739 = vperm.xlu0 %738, %v704
      %v740 = vpop.permute.xlu0 %739
      %743 = vset.pattern.permute.xlu0 0
      %744 = vperm.xlu0 %743, %v705
      %v745 = vpop.permute.xlu0 %744
      %748 = vset.pattern.permute.xlu0 0
      %749 = vperm.xlu0 %748, %v706
      %v750 = vpop.permute.xlu0 %749
      %753 = vset.pattern.permute.xlu0 0
      %754 = vperm.xlu0 %753, %v707
      %v755 = vpop.permute.xlu0 %754
      %758 = vset.pattern.permute.xlu0 0
      %759 = vperm.xlu0 %758, %v708
      %v760 = vpop.permute.xlu0 %759
      %763 = vset.pattern.permute.xlu0 0
      %764 = vperm.xlu0 %763, %v709
      %v765 = vpop.permute.xlu0 %764
      %768 = vset.pattern.permute.xlu0 0
      %769 = vperm.xlu0 %768, %v710
      %v770 = vpop.permute.xlu0 %769
      %773 = vset.pattern.permute.xlu0 0
      %774 = vperm.xlu0 %773, %v711
      %v775 = vpop.permute.xlu0 %774
      %778 = vset.pattern.permute.xlu0 0
      %779 = vperm.xlu0 %778, %v712
      %v780 = vpop.permute.xlu0 %779
      %783 = vset.pattern.permute.xlu0 0
      %784 = vperm.xlu0 %783, %v713
      %v785 = vpop.permute.xlu0 %784
      %788 = vset.pattern.permute.xlu0 0
      %789 = vperm.xlu0 %788, %v714
      %v790 = vpop.permute.xlu0 %789
      %793 = vset.pattern.permute.xlu0 0
      %794 = vperm.xlu0 %793, %v715
      %v795 = vpop.permute.xlu0 %794
      %v797 = vmul.f32 %v716, %v720
      %v798 = vmul.f32 %v716, %v725
      %v799 = vmul.f32 %v716, %v730
      %v800 = vmul.f32 %v716, %v735
      %v801 = vmul.f32 %v716, %v740
      %v802 = vmul.f32 %v716, %v745
      %v803 = vmul.f32 %v716, %v750
      %v804 = vmul.f32 %v716, %v755
      %v805 = vmul.f32 %v716, %v760
      %v806 = vmul.f32 %v716, %v765
      %v807 = vmul.f32 %v716, %v770
      %v808 = vmul.f32 %v716, %v775
      %v809 = vmul.f32 %v716, %v780
      %v810 = vmul.f32 %v716, %v785
      %v811 = vmul.f32 %v716, %v790
      %v812 = vmul.f32 %v716, %v795
      %v813 = vadd.f32 %v501, %v797
      %v814 = vadd.f32 %v502, %v798
      %v815 = vadd.f32 %v503, %v799
      %v816 = vadd.f32 %v504, %v800
      %v817 = vadd.f32 %v505, %v801
      %v818 = vadd.f32 %v506, %v802
      %v819 = vadd.f32 %v507, %v803
      %v820 = vadd.f32 %v508, %v804
      %v821 = vadd.f32 %v509, %v805
      %v822 = vadd.f32 %v510, %v806
      %v823 = vadd.f32 %v511, %v807
      %v824 = vadd.f32 %v512, %v808
      %v825 = vadd.f32 %v513, %v809
      %v826 = vadd.f32 %v514, %v810
      %v827 = vadd.f32 %v515, %v811
      %v828 = vadd.f32 %v516, %v812
      %v829 = vmul.f32 %v700, %v700
      %v830 = vmul.f32 %v701, %v701
      %v831 = vmul.f32 %v702, %v702
      %v832 = vmul.f32 %v703, %v703
      %v833 = vmul.f32 %v704, %v704
      %v834 = vmul.f32 %v705, %v705
      %v835 = vmul.f32 %v706, %v706
      %v836 = vmul.f32 %v707, %v707
      %v837 = vmul.f32 %v708, %v708
      %v838 = vmul.f32 %v709, %v709
      %v839 = vmul.f32 %v710, %v710
      %v840 = vmul.f32 %v711, %v711
      %v841 = vmul.f32 %v712, %v712
      %v842 = vmul.f32 %v713, %v713
      %v843 = vmul.f32 %v714, %v714
      %v844 = vmul.f32 %v715, %v715
      %v845 = vsub.f32 1.0, %v829
      %v846 = vsub.f32 1.0, %v830
      %v847 = vsub.f32 1.0, %v831
      %v848 = vsub.f32 1.0, %v832
      %v849 = vsub.f32 1.0, %v833
      %v850 = vsub.f32 1.0, %v834
      %v851 = vsub.f32 1.0, %v835
      %v852 = vsub.f32 1.0, %v836
      %v853 = vsub.f32 1.0, %v837
      %v854 = vsub.f32 1.0, %v838
      %v855 = vsub.f32 1.0, %v839
      %v856 = vsub.f32 1.0, %v840
      %v857 = vsub.f32 1.0, %v841
      %v858 = vsub.f32 1.0, %v842
      %v859 = vsub.f32 1.0, %v843
      %v860 = vsub.f32 1.0, %v844
      %v861 = vperm.slane %v617, 0
      %v862 = vmul.f32 %v845, %v861
      %v863 = vmul.f32 %v846, %v861
      %v864 = vmul.f32 %v847, %v861
      %v865 = vmul.f32 %v848, %v861
      %v866 = vmul.f32 %v849, %v861
      %v867 = vmul.f32 %v850, %v861
      %v868 = vmul.f32 %v851, %v861
      %v869 = vmul.f32 %v852, %v861
      %v870 = vmul.f32 %v853, %v861
      %v871 = vmul.f32 %v854, %v861
      %v872 = vmul.f32 %v855, %v861
      %v873 = vmul.f32 %v856, %v861
      %v874 = vmul.f32 %v857, %v861
      %v875 = vmul.f32 %v858, %v861
      %v876 = vmul.f32 %v859, %v861
      %v877 = vmul.f32 %v860, %v861
      %v878 = vadd.f32 %v862, 1.0
      %v879 = vadd.f32 %v863, 1.0
      %v880 = vadd.f32 %v864, 1.0
      %v881 = vadd.f32 %v865, 1.0
      %v882 = vadd.f32 %v866, 1.0
      %v883 = vadd.f32 %v867, 1.0
      %v884 = vadd.f32 %v868, 1.0
      %v885 = vadd.f32 %v869, 1.0
      %v886 = vadd.f32 %v870, 1.0
      %v887 = vadd.f32 %v871, 1.0
      %v888 = vadd.f32 %v872, 1.0
      %v889 = vadd.f32 %v873, 1.0
      %v890 = vadd.f32 %v874, 1.0
      %v891 = vadd.f32 %v875, 1.0
      %v892 = vadd.f32 %v876, 1.0
      %v893 = vadd.f32 %v877, 1.0
      %v894 = vand.u32 2147483647, %v878
      %v895 = vand.u32 2147483647, %v879
      %v896 = vand.u32 2147483647, %v880
      %v897 = vand.u32 2147483647, %v881
      %v898 = vand.u32 2147483647, %v882
      %v899 = vand.u32 2147483647, %v883
      %v900 = vand.u32 2147483647, %v884
      %v901 = vand.u32 2147483647, %v885
      %v902 = vand.u32 2147483647, %v886
      %v903 = vand.u32 2147483647, %v887
      %v904 = vand.u32 2147483647, %v888
      %v905 = vand.u32 2147483647, %v889
      %v906 = vand.u32 2147483647, %v890
      %v907 = vand.u32 2147483647, %v891
      %v908 = vand.u32 2147483647, %v892
      %v909 = vand.u32 2147483647, %v893
      %v910 = vlog2.pop %v894
      %v911 = vmul.f32 %v910, 0.6931472
      %v912 = vlog2.pop %v895
      %v913 = vmul.f32 %v912, 0.6931472
      %v914 = vlog2.pop %v896
      %v915 = vmul.f32 %v914, 0.6931472
      %v916 = vlog2.pop %v897
      %v917 = vmul.f32 %v916, 0.6931472
      %v918 = vlog2.pop %v898
      %v919 = vmul.f32 %v918, 0.6931472
      %v920 = vlog2.pop %v899
      %v921 = vmul.f32 %v920, 0.6931472
      %v922 = vlog2.pop %v900
      %v923 = vmul.f32 %v922, 0.6931472
      %v924 = vlog2.pop %v901
      %v925 = vmul.f32 %v924, 0.6931472
      %v926 = vlog2.pop %v902
      %v927 = vmul.f32 %v926, 0.6931472
      %v928 = vlog2.pop %v903
      %v929 = vmul.f32 %v928, 0.6931472
      %v930 = vlog2.pop %v904
      %v931 = vmul.f32 %v930, 0.6931472
      %v932 = vlog2.pop %v905
      %v933 = vmul.f32 %v932, 0.6931472
      %v934 = vlog2.pop %v906
      %v935 = vmul.f32 %v934, 0.6931472
      %v936 = vlog2.pop %v907
      %v937 = vmul.f32 %v936, 0.6931472
      %v938 = vlog2.pop %v908
      %v939 = vmul.f32 %v938, 0.6931472
      %v940 = vlog2.pop %v909
      %v941 = vmul.f32 %v940, 0.6931472
      %v942 = vadd.f32 %v911, 0.0
      %v943 = vadd.f32 %v913, 0.0
      %v944 = vadd.f32 %v915, 0.0
      %v945 = vadd.f32 %v917, 0.0
      %v946 = vadd.f32 %v919, 0.0
      %v947 = vadd.f32 %v921, 0.0
      %v948 = vadd.f32 %v923, 0.0
      %v949 = vadd.f32 %v925, 0.0
      %v950 = vadd.f32 %v927, 0.0
      %v951 = vadd.f32 %v929, 0.0
      %v952 = vadd.f32 %v931, 0.0
      %v953 = vadd.f32 %v933, 0.0
      %v954 = vadd.f32 %v935, 0.0
      %v955 = vadd.f32 %v937, 0.0
      %v956 = vadd.f32 %v939, 0.0
      %v957 = vadd.f32 %v941, 0.0
      %v958 = vld [vmem:[%s5 + $0x1] sm:$0x1]
      %v959 = vld [vmem:[%s6 + $0x1] sm:$0x1]
      %v960 = vld [vmem:[%s7 + $0x1] sm:$0x1]
      %v961 = vld [vmem:[%s8 + $0x1] sm:$0x1]
      %v962 = vperm.slane %v958, 0
      %v963 = vmul.f32 %v813, %v962
      %v964 = vmul.f32 %v814, %v962
      %v965 = vmul.f32 %v815, %v962
      %v966 = vmul.f32 %v816, %v962
      %v967 = vmul.f32 %v817, %v962
      %v968 = vmul.f32 %v818, %v962
      %v969 = vmul.f32 %v819, %v962
      %v970 = vmul.f32 %v820, %v962
      %v971 = vmul.f32 %v821, %v962
      %v972 = vmul.f32 %v822, %v962
      %v973 = vmul.f32 %v823, %v962
      %v974 = vmul.f32 %v824, %v962
      %v975 = vmul.f32 %v825, %v962
      %v976 = vmul.f32 %v826, %v962
      %v977 = vmul.f32 %v827, %v962
      %v978 = vmul.f32 %v828, %v962
      %v979 = vsel %vm517, %v963, 0.0
      %980 = vadd.xlane.f32.xlu0 %v979
      %v981 = vpop.xlane.xlu0 %980
      %v982 = vsel %vm517, %v964, 0.0
      %983 = vadd.xlane.f32.xlu0 %v982
      %v984 = vpop.xlane.xlu0 %983
      %v985 = vsel %vm517, %v965, 0.0
      %986 = vadd.xlane.f32.xlu0 %v985
      %v987 = vpop.xlane.xlu0 %986
      %v988 = vsel %vm517, %v966, 0.0
      %989 = vadd.xlane.f32.xlu0 %v988
      %v990 = vpop.xlane.xlu0 %989
      %v991 = vsel %vm517, %v967, 0.0
      %992 = vadd.xlane.f32.xlu0 %v991
      %v993 = vpop.xlane.xlu0 %992
      %v994 = vsel %vm517, %v968, 0.0
      %995 = vadd.xlane.f32.xlu0 %v994
      %v996 = vpop.xlane.xlu0 %995
      %v997 = vsel %vm517, %v969, 0.0
      %998 = vadd.xlane.f32.xlu0 %v997
      %v999 = vpop.xlane.xlu0 %998
      %v1000 = vsel %vm517, %v970, 0.0
      %1001 = vadd.xlane.f32.xlu0 %v1000
      %v1002 = vpop.xlane.xlu0 %1001
      %v1003 = vsel %vm517, %v971, 0.0
      %1004 = vadd.xlane.f32.xlu0 %v1003
      %v1005 = vpop.xlane.xlu0 %1004
      %v1006 = vsel %vm517, %v972, 0.0
      %1007 = vadd.xlane.f32.xlu0 %v1006
      %v1008 = vpop.xlane.xlu0 %1007
      %v1009 = vsel %vm517, %v973, 0.0
      %1010 = vadd.xlane.f32.xlu0 %v1009
      %v1011 = vpop.xlane.xlu0 %1010
      %v1012 = vsel %vm517, %v974, 0.0
      %1013 = vadd.xlane.f32.xlu0 %v1012
      %v1014 = vpop.xlane.xlu0 %1013
      %v1015 = vsel %vm517, %v975, 0.0
      %1016 = vadd.xlane.f32.xlu0 %v1015
      %v1017 = vpop.xlane.xlu0 %1016
      %v1018 = vsel %vm517, %v976, 0.0
      %1019 = vadd.xlane.f32.xlu0 %v1018
      %v1020 = vpop.xlane.xlu0 %1019
      %v1021 = vsel %vm517, %v977, 0.0
      %1022 = vadd.xlane.f32.xlu0 %v1021
      %v1023 = vpop.xlane.xlu0 %1022
      %v1024 = vsel %vm517, %v978, 0.0
      %1025 = vadd.xlane.f32.xlu0 %v1024
      %v1026 = vpop.xlane.xlu0 %1025
      %v1027 = vperm.slane %v960, 0
      %v1028 = vadd.f32 %v981, %v1027
      %v1029 = vadd.f32 %v984, %v1027
      %v1030 = vadd.f32 %v987, %v1027
      %v1031 = vadd.f32 %v990, %v1027
      %v1032 = vadd.f32 %v993, %v1027
      %v1033 = vadd.f32 %v996, %v1027
      %v1034 = vadd.f32 %v999, %v1027
      %v1035 = vadd.f32 %v1002, %v1027
      %v1036 = vadd.f32 %v1005, %v1027
      %v1037 = vadd.f32 %v1008, %v1027
      %v1038 = vadd.f32 %v1011, %v1027
      %v1039 = vadd.f32 %v1014, %v1027
      %v1040 = vadd.f32 %v1017, %v1027
      %v1041 = vadd.f32 %v1020, %v1027
      %v1042 = vadd.f32 %v1023, %v1027
      %v1043 = vadd.f32 %v1026, %v1027
      %v1044 = vtanh.pop %v1028
      %v1045 = vtanh.pop %v1029
      %v1046 = vtanh.pop %v1030
      %v1047 = vtanh.pop %v1031
      %v1048 = vtanh.pop %v1032
      %v1049 = vtanh.pop %v1033
      %v1050 = vtanh.pop %v1034
      %v1051 = vtanh.pop %v1035
      %v1052 = vtanh.pop %v1036
      %v1053 = vtanh.pop %v1037
      %v1054 = vtanh.pop %v1038
      %v1055 = vtanh.pop %v1039
      %v1056 = vtanh.pop %v1040
      %v1057 = vtanh.pop %v1041
      %v1058 = vtanh.pop %v1042
      %v1059 = vtanh.pop %v1043
      %v1060 = vperm.slane %v959, 0
      %1062 = vset.pattern.permute.xlu0 0
      %1063 = vperm.xlu0 %1062, %v1044
      %v1064 = vpop.permute.xlu0 %1063
      %1067 = vset.pattern.permute.xlu0 0
      %1068 = vperm.xlu0 %1067, %v1045
      %v1069 = vpop.permute.xlu0 %1068
      %1072 = vset.pattern.permute.xlu0 0
      %1073 = vperm.xlu0 %1072, %v1046
      %v1074 = vpop.permute.xlu0 %1073
      %1077 = vset.pattern.permute.xlu0 0
      %1078 = vperm.xlu0 %1077, %v1047
      %v1079 = vpop.permute.xlu0 %1078
      %1082 = vset.pattern.permute.xlu0 0
      %1083 = vperm.xlu0 %1082, %v1048
      %v1084 = vpop.permute.xlu0 %1083
      %1087 = vset.pattern.permute.xlu0 0
      %1088 = vperm.xlu0 %1087, %v1049
      %v1089 = vpop.permute.xlu0 %1088
      %1092 = vset.pattern.permute.xlu0 0
      %1093 = vperm.xlu0 %1092, %v1050
      %v1094 = vpop.permute.xlu0 %1093
      %1097 = vset.pattern.permute.xlu0 0
      %1098 = vperm.xlu0 %1097, %v1051
      %v1099 = vpop.permute.xlu0 %1098
      %1102 = vset.pattern.permute.xlu0 0
      %1103 = vperm.xlu0 %1102, %v1052
      %v1104 = vpop.permute.xlu0 %1103
      %1107 = vset.pattern.permute.xlu0 0
      %1108 = vperm.xlu0 %1107, %v1053
      %v1109 = vpop.permute.xlu0 %1108
      %1112 = vset.pattern.permute.xlu0 0
      %1113 = vperm.xlu0 %1112, %v1054
      %v1114 = vpop.permute.xlu0 %1113
      %1117 = vset.pattern.permute.xlu0 0
      %1118 = vperm.xlu0 %1117, %v1055
      %v1119 = vpop.permute.xlu0 %1118
      %1122 = vset.pattern.permute.xlu0 0
      %1123 = vperm.xlu0 %1122, %v1056
      %v1124 = vpop.permute.xlu0 %1123
      %1127 = vset.pattern.permute.xlu0 0
      %1128 = vperm.xlu0 %1127, %v1057
      %v1129 = vpop.permute.xlu0 %1128
      %1132 = vset.pattern.permute.xlu0 0
      %1133 = vperm.xlu0 %1132, %v1058
      %v1134 = vpop.permute.xlu0 %1133
      %1137 = vset.pattern.permute.xlu0 0
      %1138 = vperm.xlu0 %1137, %v1059
      %v1139 = vpop.permute.xlu0 %1138
      %v1141 = vmul.f32 %v1060, %v1064
      %v1142 = vmul.f32 %v1060, %v1069
      %v1143 = vmul.f32 %v1060, %v1074
      %v1144 = vmul.f32 %v1060, %v1079
      %v1145 = vmul.f32 %v1060, %v1084
      %v1146 = vmul.f32 %v1060, %v1089
      %v1147 = vmul.f32 %v1060, %v1094
      %v1148 = vmul.f32 %v1060, %v1099
      %v1149 = vmul.f32 %v1060, %v1104
      %v1150 = vmul.f32 %v1060, %v1109
      %v1151 = vmul.f32 %v1060, %v1114
      %v1152 = vmul.f32 %v1060, %v1119
      %v1153 = vmul.f32 %v1060, %v1124
      %v1154 = vmul.f32 %v1060, %v1129
      %v1155 = vmul.f32 %v1060, %v1134
      %v1156 = vmul.f32 %v1060, %v1139
      %v1157 = vadd.f32 %v813, %v1141
      %v1158 = vadd.f32 %v814, %v1142
      %v1159 = vadd.f32 %v815, %v1143
      %v1160 = vadd.f32 %v816, %v1144
      %v1161 = vadd.f32 %v817, %v1145
      %v1162 = vadd.f32 %v818, %v1146
      %v1163 = vadd.f32 %v819, %v1147
      %v1164 = vadd.f32 %v820, %v1148
      %v1165 = vadd.f32 %v821, %v1149
      %v1166 = vadd.f32 %v822, %v1150
      %v1167 = vadd.f32 %v823, %v1151
      %v1168 = vadd.f32 %v824, %v1152
      %v1169 = vadd.f32 %v825, %v1153
      %v1170 = vadd.f32 %v826, %v1154
      %v1171 = vadd.f32 %v827, %v1155
      %v1172 = vadd.f32 %v828, %v1156
      %v1173 = vmul.f32 %v1044, %v1044
      %v1174 = vmul.f32 %v1045, %v1045
      %v1175 = vmul.f32 %v1046, %v1046
      %v1176 = vmul.f32 %v1047, %v1047
      %v1177 = vmul.f32 %v1048, %v1048
      %v1178 = vmul.f32 %v1049, %v1049
      %v1179 = vmul.f32 %v1050, %v1050
      %v1180 = vmul.f32 %v1051, %v1051
      %v1181 = vmul.f32 %v1052, %v1052
      %v1182 = vmul.f32 %v1053, %v1053
      %v1183 = vmul.f32 %v1054, %v1054
      %v1184 = vmul.f32 %v1055, %v1055
      %v1185 = vmul.f32 %v1056, %v1056
      %v1186 = vmul.f32 %v1057, %v1057
      %v1187 = vmul.f32 %v1058, %v1058
      %v1188 = vmul.f32 %v1059, %v1059
      %v1189 = vsub.f32 1.0, %v1173
      %v1190 = vsub.f32 1.0, %v1174
      %v1191 = vsub.f32 1.0, %v1175
      %v1192 = vsub.f32 1.0, %v1176
      %v1193 = vsub.f32 1.0, %v1177
      %v1194 = vsub.f32 1.0, %v1178
      %v1195 = vsub.f32 1.0, %v1179
      %v1196 = vsub.f32 1.0, %v1180
      %v1197 = vsub.f32 1.0, %v1181
      %v1198 = vsub.f32 1.0, %v1182
      %v1199 = vsub.f32 1.0, %v1183
      %v1200 = vsub.f32 1.0, %v1184
      %v1201 = vsub.f32 1.0, %v1185
      %v1202 = vsub.f32 1.0, %v1186
      %v1203 = vsub.f32 1.0, %v1187
      %v1204 = vsub.f32 1.0, %v1188
      %v1205 = vperm.slane %v961, 0
      %v1206 = vmul.f32 %v1189, %v1205
      %v1207 = vmul.f32 %v1190, %v1205
      %v1208 = vmul.f32 %v1191, %v1205
      %v1209 = vmul.f32 %v1192, %v1205
      %v1210 = vmul.f32 %v1193, %v1205
      %v1211 = vmul.f32 %v1194, %v1205
      %v1212 = vmul.f32 %v1195, %v1205
      %v1213 = vmul.f32 %v1196, %v1205
      %v1214 = vmul.f32 %v1197, %v1205
      %v1215 = vmul.f32 %v1198, %v1205
      %v1216 = vmul.f32 %v1199, %v1205
      %v1217 = vmul.f32 %v1200, %v1205
      %v1218 = vmul.f32 %v1201, %v1205
      %v1219 = vmul.f32 %v1202, %v1205
      %v1220 = vmul.f32 %v1203, %v1205
      %v1221 = vmul.f32 %v1204, %v1205
      %v1222 = vadd.f32 %v1206, 1.0
      %v1223 = vadd.f32 %v1207, 1.0
      %v1224 = vadd.f32 %v1208, 1.0
      %v1225 = vadd.f32 %v1209, 1.0
      %v1226 = vadd.f32 %v1210, 1.0
      %v1227 = vadd.f32 %v1211, 1.0
      %v1228 = vadd.f32 %v1212, 1.0
      %v1229 = vadd.f32 %v1213, 1.0
      %v1230 = vadd.f32 %v1214, 1.0
      %v1231 = vadd.f32 %v1215, 1.0
      %v1232 = vadd.f32 %v1216, 1.0
      %v1233 = vadd.f32 %v1217, 1.0
      %v1234 = vadd.f32 %v1218, 1.0
      %v1235 = vadd.f32 %v1219, 1.0
      %v1236 = vadd.f32 %v1220, 1.0
      %v1237 = vadd.f32 %v1221, 1.0
      %v1238 = vand.u32 2147483647, %v1222
      %v1239 = vand.u32 2147483647, %v1223
      %v1240 = vand.u32 2147483647, %v1224
      %v1241 = vand.u32 2147483647, %v1225
      %v1242 = vand.u32 2147483647, %v1226
      %v1243 = vand.u32 2147483647, %v1227
      %v1244 = vand.u32 2147483647, %v1228
      %v1245 = vand.u32 2147483647, %v1229
      %v1246 = vand.u32 2147483647, %v1230
      %v1247 = vand.u32 2147483647, %v1231
      %v1248 = vand.u32 2147483647, %v1232
      %v1249 = vand.u32 2147483647, %v1233
      %v1250 = vand.u32 2147483647, %v1234
      %v1251 = vand.u32 2147483647, %v1235
      %v1252 = vand.u32 2147483647, %v1236
      %v1253 = vand.u32 2147483647, %v1237
      %v1254 = vlog2.pop %v1238
      %v1255 = vmul.f32 %v1254, 0.6931472
      %v1256 = vlog2.pop %v1239
      %v1257 = vmul.f32 %v1256, 0.6931472
      %v1258 = vlog2.pop %v1240
      %v1259 = vmul.f32 %v1258, 0.6931472
      %v1260 = vlog2.pop %v1241
      %v1261 = vmul.f32 %v1260, 0.6931472
      %v1262 = vlog2.pop %v1242
      %v1263 = vmul.f32 %v1262, 0.6931472
      %v1264 = vlog2.pop %v1243
      %v1265 = vmul.f32 %v1264, 0.6931472
      %v1266 = vlog2.pop %v1244
      %v1267 = vmul.f32 %v1266, 0.6931472
      %v1268 = vlog2.pop %v1245
      %v1269 = vmul.f32 %v1268, 0.6931472
      %v1270 = vlog2.pop %v1246
      %v1271 = vmul.f32 %v1270, 0.6931472
      %v1272 = vlog2.pop %v1247
      %v1273 = vmul.f32 %v1272, 0.6931472
      %v1274 = vlog2.pop %v1248
      %v1275 = vmul.f32 %v1274, 0.6931472
      %v1276 = vlog2.pop %v1249
      %v1277 = vmul.f32 %v1276, 0.6931472
      %v1278 = vlog2.pop %v1250
      %v1279 = vmul.f32 %v1278, 0.6931472
      %v1280 = vlog2.pop %v1251
      %v1281 = vmul.f32 %v1280, 0.6931472
      %v1282 = vlog2.pop %v1252
      %v1283 = vmul.f32 %v1282, 0.6931472
      %v1284 = vlog2.pop %v1253
      %v1285 = vmul.f32 %v1284, 0.6931472
      %v1286 = vadd.f32 %v942, %v1255
      %v1287 = vadd.f32 %v943, %v1257
      %v1288 = vadd.f32 %v944, %v1259
      %v1289 = vadd.f32 %v945, %v1261
      %v1290 = vadd.f32 %v946, %v1263
      %v1291 = vadd.f32 %v947, %v1265
      %v1292 = vadd.f32 %v948, %v1267
      %v1293 = vadd.f32 %v949, %v1269
      %v1294 = vadd.f32 %v950, %v1271
      %v1295 = vadd.f32 %v951, %v1273
      %v1296 = vadd.f32 %v952, %v1275
      %v1297 = vadd.f32 %v953, %v1277
      %v1298 = vadd.f32 %v954, %v1279
      %v1299 = vadd.f32 %v955, %v1281
      %v1300 = vadd.f32 %v956, %v1283
      %v1301 = vadd.f32 %v957, %v1285
      %v1302 = vld [vmem:[%s5 + $0x2] sm:$0x1]
      %v1303 = vld [vmem:[%s6 + $0x2] sm:$0x1]
      %v1304 = vld [vmem:[%s7 + $0x2] sm:$0x1]
      %v1305 = vld [vmem:[%s8 + $0x2] sm:$0x1]
      %v1306 = vperm.slane %v1302, 0
      %v1307 = vmul.f32 %v1157, %v1306
      %v1308 = vmul.f32 %v1158, %v1306
      %v1309 = vmul.f32 %v1159, %v1306
      %v1310 = vmul.f32 %v1160, %v1306
      %v1311 = vmul.f32 %v1161, %v1306
      %v1312 = vmul.f32 %v1162, %v1306
      %v1313 = vmul.f32 %v1163, %v1306
      %v1314 = vmul.f32 %v1164, %v1306
      %v1315 = vmul.f32 %v1165, %v1306
      %v1316 = vmul.f32 %v1166, %v1306
      %v1317 = vmul.f32 %v1167, %v1306
      %v1318 = vmul.f32 %v1168, %v1306
      %v1319 = vmul.f32 %v1169, %v1306
      %v1320 = vmul.f32 %v1170, %v1306
      %v1321 = vmul.f32 %v1171, %v1306
      %v1322 = vmul.f32 %v1172, %v1306
      %v1323 = vsel %vm517, %v1307, 0.0
      %1324 = vadd.xlane.f32.xlu0 %v1323
      %v1325 = vpop.xlane.xlu0 %1324
      %v1326 = vsel %vm517, %v1308, 0.0
      %1327 = vadd.xlane.f32.xlu0 %v1326
      %v1328 = vpop.xlane.xlu0 %1327
      %v1329 = vsel %vm517, %v1309, 0.0
      %1330 = vadd.xlane.f32.xlu0 %v1329
      %v1331 = vpop.xlane.xlu0 %1330
      %v1332 = vsel %vm517, %v1310, 0.0
      %1333 = vadd.xlane.f32.xlu0 %v1332
      %v1334 = vpop.xlane.xlu0 %1333
      %v1335 = vsel %vm517, %v1311, 0.0
      %1336 = vadd.xlane.f32.xlu0 %v1335
      %v1337 = vpop.xlane.xlu0 %1336
      %v1338 = vsel %vm517, %v1312, 0.0
      %1339 = vadd.xlane.f32.xlu0 %v1338
      %v1340 = vpop.xlane.xlu0 %1339
      %v1341 = vsel %vm517, %v1313, 0.0
      %1342 = vadd.xlane.f32.xlu0 %v1341
      %v1343 = vpop.xlane.xlu0 %1342
      %v1344 = vsel %vm517, %v1314, 0.0
      %1345 = vadd.xlane.f32.xlu0 %v1344
      %v1346 = vpop.xlane.xlu0 %1345
      %v1347 = vsel %vm517, %v1315, 0.0
      %1348 = vadd.xlane.f32.xlu0 %v1347
      %v1349 = vpop.xlane.xlu0 %1348
      %v1350 = vsel %vm517, %v1316, 0.0
      %1351 = vadd.xlane.f32.xlu0 %v1350
      %v1352 = vpop.xlane.xlu0 %1351
      %v1353 = vsel %vm517, %v1317, 0.0
      %1354 = vadd.xlane.f32.xlu0 %v1353
      %v1355 = vpop.xlane.xlu0 %1354
      %v1356 = vsel %vm517, %v1318, 0.0
      %1357 = vadd.xlane.f32.xlu0 %v1356
      %v1358 = vpop.xlane.xlu0 %1357
      %v1359 = vsel %vm517, %v1319, 0.0
      %1360 = vadd.xlane.f32.xlu0 %v1359
      %v1361 = vpop.xlane.xlu0 %1360
      %v1362 = vsel %vm517, %v1320, 0.0
      %1363 = vadd.xlane.f32.xlu0 %v1362
      %v1364 = vpop.xlane.xlu0 %1363
      %v1365 = vsel %vm517, %v1321, 0.0
      %1366 = vadd.xlane.f32.xlu0 %v1365
      %v1367 = vpop.xlane.xlu0 %1366
      %v1368 = vsel %vm517, %v1322, 0.0
      %1369 = vadd.xlane.f32.xlu0 %v1368
      %v1370 = vpop.xlane.xlu0 %1369
      %v1371 = vperm.slane %v1304, 0
      %v1372 = vadd.f32 %v1325, %v1371
      %v1373 = vadd.f32 %v1328, %v1371
      %v1374 = vadd.f32 %v1331, %v1371
      %v1375 = vadd.f32 %v1334, %v1371
      %v1376 = vadd.f32 %v1337, %v1371
      %v1377 = vadd.f32 %v1340, %v1371
      %v1378 = vadd.f32 %v1343, %v1371
      %v1379 = vadd.f32 %v1346, %v1371
      %v1380 = vadd.f32 %v1349, %v1371
      %v1381 = vadd.f32 %v1352, %v1371
      %v1382 = vadd.f32 %v1355, %v1371
      %v1383 = vadd.f32 %v1358, %v1371
      %v1384 = vadd.f32 %v1361, %v1371
      %v1385 = vadd.f32 %v1364, %v1371
      %v1386 = vadd.f32 %v1367, %v1371
      %v1387 = vadd.f32 %v1370, %v1371
      %v1388 = vtanh.pop %v1372
      %v1389 = vtanh.pop %v1373
      %v1390 = vtanh.pop %v1374
      %v1391 = vtanh.pop %v1375
      %v1392 = vtanh.pop %v1376
      %v1393 = vtanh.pop %v1377
      %v1394 = vtanh.pop %v1378
      %v1395 = vtanh.pop %v1379
      %v1396 = vtanh.pop %v1380
      %v1397 = vtanh.pop %v1381
      %v1398 = vtanh.pop %v1382
      %v1399 = vtanh.pop %v1383
      %v1400 = vtanh.pop %v1384
      %v1401 = vtanh.pop %v1385
      %v1402 = vtanh.pop %v1386
      %v1403 = vtanh.pop %v1387
      %v1404 = vperm.slane %v1303, 0
      %1406 = vset.pattern.permute.xlu0 0
      %1407 = vperm.xlu0 %1406, %v1388
      %v1408 = vpop.permute.xlu0 %1407
      %1411 = vset.pattern.permute.xlu0 0
      %1412 = vperm.xlu0 %1411, %v1389
      %v1413 = vpop.permute.xlu0 %1412
      %1416 = vset.pattern.permute.xlu0 0
      %1417 = vperm.xlu0 %1416, %v1390
      %v1418 = vpop.permute.xlu0 %1417
      %1421 = vset.pattern.permute.xlu0 0
      %1422 = vperm.xlu0 %1421, %v1391
      %v1423 = vpop.permute.xlu0 %1422
      %1426 = vset.pattern.permute.xlu0 0
      %1427 = vperm.xlu0 %1426, %v1392
      %v1428 = vpop.permute.xlu0 %1427
      %1431 = vset.pattern.permute.xlu0 0
      %1432 = vperm.xlu0 %1431, %v1393
      %v1433 = vpop.permute.xlu0 %1432
      %1436 = vset.pattern.permute.xlu0 0
      %1437 = vperm.xlu0 %1436, %v1394
      %v1438 = vpop.permute.xlu0 %1437
      %1441 = vset.pattern.permute.xlu0 0
      %1442 = vperm.xlu0 %1441, %v1395
      %v1443 = vpop.permute.xlu0 %1442
      %1446 = vset.pattern.permute.xlu0 0
      %1447 = vperm.xlu0 %1446, %v1396
      %v1448 = vpop.permute.xlu0 %1447
      %1451 = vset.pattern.permute.xlu0 0
      %1452 = vperm.xlu0 %1451, %v1397
      %v1453 = vpop.permute.xlu0 %1452
      %1456 = vset.pattern.permute.xlu0 0
      %1457 = vperm.xlu0 %1456, %v1398
      %v1458 = vpop.permute.xlu0 %1457
      %1461 = vset.pattern.permute.xlu0 0
      %1462 = vperm.xlu0 %1461, %v1399
      %v1463 = vpop.permute.xlu0 %1462
      %1466 = vset.pattern.permute.xlu0 0
      %1467 = vperm.xlu0 %1466, %v1400
      %v1468 = vpop.permute.xlu0 %1467
      %1471 = vset.pattern.permute.xlu0 0
      %1472 = vperm.xlu0 %1471, %v1401
      %v1473 = vpop.permute.xlu0 %1472
      %1476 = vset.pattern.permute.xlu0 0
      %1477 = vperm.xlu0 %1476, %v1402
      %v1478 = vpop.permute.xlu0 %1477
      %1481 = vset.pattern.permute.xlu0 0
      %1482 = vperm.xlu0 %1481, %v1403
      %v1483 = vpop.permute.xlu0 %1482
      %v1485 = vmul.f32 %v1404, %v1408
      %v1486 = vmul.f32 %v1404, %v1413
      %v1487 = vmul.f32 %v1404, %v1418
      %v1488 = vmul.f32 %v1404, %v1423
      %v1489 = vmul.f32 %v1404, %v1428
      %v1490 = vmul.f32 %v1404, %v1433
      %v1491 = vmul.f32 %v1404, %v1438
      %v1492 = vmul.f32 %v1404, %v1443
      %v1493 = vmul.f32 %v1404, %v1448
      %v1494 = vmul.f32 %v1404, %v1453
      %v1495 = vmul.f32 %v1404, %v1458
      %v1496 = vmul.f32 %v1404, %v1463
      %v1497 = vmul.f32 %v1404, %v1468
      %v1498 = vmul.f32 %v1404, %v1473
      %v1499 = vmul.f32 %v1404, %v1478
      %v1500 = vmul.f32 %v1404, %v1483
      %v1501 = vadd.f32 %v1157, %v1485
      %v1502 = vadd.f32 %v1158, %v1486
      %v1503 = vadd.f32 %v1159, %v1487
      %v1504 = vadd.f32 %v1160, %v1488
      %v1505 = vadd.f32 %v1161, %v1489
      %v1506 = vadd.f32 %v1162, %v1490
      %v1507 = vadd.f32 %v1163, %v1491
      %v1508 = vadd.f32 %v1164, %v1492
      %v1509 = vadd.f32 %v1165, %v1493
      %v1510 = vadd.f32 %v1166, %v1494
      %v1511 = vadd.f32 %v1167, %v1495
      %v1512 = vadd.f32 %v1168, %v1496
      %v1513 = vadd.f32 %v1169, %v1497
      %v1514 = vadd.f32 %v1170, %v1498
      %v1515 = vadd.f32 %v1171, %v1499
      %v1516 = vadd.f32 %v1172, %v1500
      %v1517 = vmul.f32 %v1388, %v1388
      %v1518 = vmul.f32 %v1389, %v1389
      %v1519 = vmul.f32 %v1390, %v1390
      %v1520 = vmul.f32 %v1391, %v1391
      %v1521 = vmul.f32 %v1392, %v1392
      %v1522 = vmul.f32 %v1393, %v1393
      %v1523 = vmul.f32 %v1394, %v1394
      %v1524 = vmul.f32 %v1395, %v1395
      %v1525 = vmul.f32 %v1396, %v1396
      %v1526 = vmul.f32 %v1397, %v1397
      %v1527 = vmul.f32 %v1398, %v1398
      %v1528 = vmul.f32 %v1399, %v1399
      %v1529 = vmul.f32 %v1400, %v1400
      %v1530 = vmul.f32 %v1401, %v1401
      %v1531 = vmul.f32 %v1402, %v1402
      %v1532 = vmul.f32 %v1403, %v1403
      %v1533 = vsub.f32 1.0, %v1517
      %v1534 = vsub.f32 1.0, %v1518
      %v1535 = vsub.f32 1.0, %v1519
      %v1536 = vsub.f32 1.0, %v1520
      %v1537 = vsub.f32 1.0, %v1521
      %v1538 = vsub.f32 1.0, %v1522
      %v1539 = vsub.f32 1.0, %v1523
      %v1540 = vsub.f32 1.0, %v1524
      %v1541 = vsub.f32 1.0, %v1525
      %v1542 = vsub.f32 1.0, %v1526
      %v1543 = vsub.f32 1.0, %v1527
      %v1544 = vsub.f32 1.0, %v1528
      %v1545 = vsub.f32 1.0, %v1529
      %v1546 = vsub.f32 1.0, %v1530
      %v1547 = vsub.f32 1.0, %v1531
      %v1548 = vsub.f32 1.0, %v1532
      %v1549 = vperm.slane %v1305, 0
      %v1550 = vmul.f32 %v1533, %v1549
      %v1551 = vmul.f32 %v1534, %v1549
      %v1552 = vmul.f32 %v1535, %v1549
      %v1553 = vmul.f32 %v1536, %v1549
      %v1554 = vmul.f32 %v1537, %v1549
      %v1555 = vmul.f32 %v1538, %v1549
      %v1556 = vmul.f32 %v1539, %v1549
      %v1557 = vmul.f32 %v1540, %v1549
      %v1558 = vmul.f32 %v1541, %v1549
      %v1559 = vmul.f32 %v1542, %v1549
      %v1560 = vmul.f32 %v1543, %v1549
      %v1561 = vmul.f32 %v1544, %v1549
      %v1562 = vmul.f32 %v1545, %v1549
      %v1563 = vmul.f32 %v1546, %v1549
      %v1564 = vmul.f32 %v1547, %v1549
      %v1565 = vmul.f32 %v1548, %v1549
      %v1566 = vadd.f32 %v1550, 1.0
      %v1567 = vadd.f32 %v1551, 1.0
      %v1568 = vadd.f32 %v1552, 1.0
      %v1569 = vadd.f32 %v1553, 1.0
      %v1570 = vadd.f32 %v1554, 1.0
      %v1571 = vadd.f32 %v1555, 1.0
      %v1572 = vadd.f32 %v1556, 1.0
      %v1573 = vadd.f32 %v1557, 1.0
      %v1574 = vadd.f32 %v1558, 1.0
      %v1575 = vadd.f32 %v1559, 1.0
      %v1576 = vadd.f32 %v1560, 1.0
      %v1577 = vadd.f32 %v1561, 1.0
      %v1578 = vadd.f32 %v1562, 1.0
      %v1579 = vadd.f32 %v1563, 1.0
      %v1580 = vadd.f32 %v1564, 1.0
      %v1581 = vadd.f32 %v1565, 1.0
      %v1582 = vand.u32 2147483647, %v1566
      %v1583 = vand.u32 2147483647, %v1567
      %v1584 = vand.u32 2147483647, %v1568
      %v1585 = vand.u32 2147483647, %v1569
      %v1586 = vand.u32 2147483647, %v1570
      %v1587 = vand.u32 2147483647, %v1571
      %v1588 = vand.u32 2147483647, %v1572
      %v1589 = vand.u32 2147483647, %v1573
      %v1590 = vand.u32 2147483647, %v1574
      %v1591 = vand.u32 2147483647, %v1575
      %v1592 = vand.u32 2147483647, %v1576
      %v1593 = vand.u32 2147483647, %v1577
      %v1594 = vand.u32 2147483647, %v1578
      %v1595 = vand.u32 2147483647, %v1579
      %v1596 = vand.u32 2147483647, %v1580
      %v1597 = vand.u32 2147483647, %v1581
      %v1598 = vlog2.pop %v1582
      %v1599 = vmul.f32 %v1598, 0.6931472
      %v1600 = vlog2.pop %v1583
      %v1601 = vmul.f32 %v1600, 0.6931472
      %v1602 = vlog2.pop %v1584
      %v1603 = vmul.f32 %v1602, 0.6931472
      %v1604 = vlog2.pop %v1585
      %v1605 = vmul.f32 %v1604, 0.6931472
      %v1606 = vlog2.pop %v1586
      %v1607 = vmul.f32 %v1606, 0.6931472
      %v1608 = vlog2.pop %v1587
      %v1609 = vmul.f32 %v1608, 0.6931472
      %v1610 = vlog2.pop %v1588
      %v1611 = vmul.f32 %v1610, 0.6931472
      %v1612 = vlog2.pop %v1589
      %v1613 = vmul.f32 %v1612, 0.6931472
      %v1614 = vlog2.pop %v1590
      %v1615 = vmul.f32 %v1614, 0.6931472
      %v1616 = vlog2.pop %v1591
      %v1617 = vmul.f32 %v1616, 0.6931472
      %v1618 = vlog2.pop %v1592
      %v1619 = vmul.f32 %v1618, 0.6931472
      %v1620 = vlog2.pop %v1593
      %v1621 = vmul.f32 %v1620, 0.6931472
      %v1622 = vlog2.pop %v1594
      %v1623 = vmul.f32 %v1622, 0.6931472
      %v1624 = vlog2.pop %v1595
      %v1625 = vmul.f32 %v1624, 0.6931472
      %v1626 = vlog2.pop %v1596
      %v1627 = vmul.f32 %v1626, 0.6931472
      %v1628 = vlog2.pop %v1597
      %v1629 = vmul.f32 %v1628, 0.6931472
      %v1630 = vadd.f32 %v1286, %v1599
      %v1631 = vadd.f32 %v1287, %v1601
      %v1632 = vadd.f32 %v1288, %v1603
      %v1633 = vadd.f32 %v1289, %v1605
      %v1634 = vadd.f32 %v1290, %v1607
      %v1635 = vadd.f32 %v1291, %v1609
      %v1636 = vadd.f32 %v1292, %v1611
      %v1637 = vadd.f32 %v1293, %v1613
      %v1638 = vadd.f32 %v1294, %v1615
      %v1639 = vadd.f32 %v1295, %v1617
      %v1640 = vadd.f32 %v1296, %v1619
      %v1641 = vadd.f32 %v1297, %v1621
      %v1642 = vadd.f32 %v1298, %v1623
      %v1643 = vadd.f32 %v1299, %v1625
      %v1644 = vadd.f32 %v1300, %v1627
      %v1645 = vadd.f32 %v1301, %v1629
      %v1646 = vld [vmem:[%s5 + $0x3] sm:$0x1]
      %v1647 = vld [vmem:[%s6 + $0x3] sm:$0x1]
      %v1648 = vld [vmem:[%s7 + $0x3] sm:$0x1]
      %v1649 = vld [vmem:[%s8 + $0x3] sm:$0x1]
      %v1650 = vperm.slane %v1646, 0
      %v1651 = vmul.f32 %v1501, %v1650
      %v1652 = vmul.f32 %v1502, %v1650
      %v1653 = vmul.f32 %v1503, %v1650
      %v1654 = vmul.f32 %v1504, %v1650
      %v1655 = vmul.f32 %v1505, %v1650
      %v1656 = vmul.f32 %v1506, %v1650
      %v1657 = vmul.f32 %v1507, %v1650
      %v1658 = vmul.f32 %v1508, %v1650
      %v1659 = vmul.f32 %v1509, %v1650
      %v1660 = vmul.f32 %v1510, %v1650
      %v1661 = vmul.f32 %v1511, %v1650
      %v1662 = vmul.f32 %v1512, %v1650
      %v1663 = vmul.f32 %v1513, %v1650
      %v1664 = vmul.f32 %v1514, %v1650
      %v1665 = vmul.f32 %v1515, %v1650
      %v1666 = vmul.f32 %v1516, %v1650
      %v1667 = vsel %vm517, %v1651, 0.0
      %1668 = vadd.xlane.f32.xlu0 %v1667
      %v1669 = vpop.xlane.xlu0 %1668
      %v1670 = vsel %vm517, %v1652, 0.0
      %1671 = vadd.xlane.f32.xlu0 %v1670
      %v1672 = vpop.xlane.xlu0 %1671
      %v1673 = vsel %vm517, %v1653, 0.0
      %1674 = vadd.xlane.f32.xlu0 %v1673
      %v1675 = vpop.xlane.xlu0 %1674
      %v1676 = vsel %vm517, %v1654, 0.0
      %1677 = vadd.xlane.f32.xlu0 %v1676
      %v1678 = vpop.xlane.xlu0 %1677
      %v1679 = vsel %vm517, %v1655, 0.0
      %1680 = vadd.xlane.f32.xlu0 %v1679
      %v1681 = vpop.xlane.xlu0 %1680
      %v1682 = vsel %vm517, %v1656, 0.0
      %1683 = vadd.xlane.f32.xlu0 %v1682
      %v1684 = vpop.xlane.xlu0 %1683
      %v1685 = vsel %vm517, %v1657, 0.0
      %1686 = vadd.xlane.f32.xlu0 %v1685
      %v1687 = vpop.xlane.xlu0 %1686
      %v1688 = vsel %vm517, %v1658, 0.0
      %1689 = vadd.xlane.f32.xlu0 %v1688
      %v1690 = vpop.xlane.xlu0 %1689
      %v1691 = vsel %vm517, %v1659, 0.0
      %1692 = vadd.xlane.f32.xlu0 %v1691
      %v1693 = vpop.xlane.xlu0 %1692
      %v1694 = vsel %vm517, %v1660, 0.0
      %1695 = vadd.xlane.f32.xlu0 %v1694
      %v1696 = vpop.xlane.xlu0 %1695
      %v1697 = vsel %vm517, %v1661, 0.0
      %1698 = vadd.xlane.f32.xlu0 %v1697
      %v1699 = vpop.xlane.xlu0 %1698
      %v1700 = vsel %vm517, %v1662, 0.0
      %1701 = vadd.xlane.f32.xlu0 %v1700
      %v1702 = vpop.xlane.xlu0 %1701
      %v1703 = vsel %vm517, %v1663, 0.0
      %1704 = vadd.xlane.f32.xlu0 %v1703
      %v1705 = vpop.xlane.xlu0 %1704
      %v1706 = vsel %vm517, %v1664, 0.0
      %1707 = vadd.xlane.f32.xlu0 %v1706
      %v1708 = vpop.xlane.xlu0 %1707
      %v1709 = vsel %vm517, %v1665, 0.0
      %1710 = vadd.xlane.f32.xlu0 %v1709
      %v1711 = vpop.xlane.xlu0 %1710
      %v1712 = vsel %vm517, %v1666, 0.0
      %1713 = vadd.xlane.f32.xlu0 %v1712
      %v1714 = vpop.xlane.xlu0 %1713
      %v1715 = vperm.slane %v1648, 0
      %v1716 = vadd.f32 %v1669, %v1715
      %v1717 = vadd.f32 %v1672, %v1715
      %v1718 = vadd.f32 %v1675, %v1715
      %v1719 = vadd.f32 %v1678, %v1715
      %v1720 = vadd.f32 %v1681, %v1715
      %v1721 = vadd.f32 %v1684, %v1715
      %v1722 = vadd.f32 %v1687, %v1715
      %v1723 = vadd.f32 %v1690, %v1715
      %v1724 = vadd.f32 %v1693, %v1715
      %v1725 = vadd.f32 %v1696, %v1715
      %v1726 = vadd.f32 %v1699, %v1715
      %v1727 = vadd.f32 %v1702, %v1715
      %v1728 = vadd.f32 %v1705, %v1715
      %v1729 = vadd.f32 %v1708, %v1715
      %v1730 = vadd.f32 %v1711, %v1715
      %v1731 = vadd.f32 %v1714, %v1715
      %v1732 = vtanh.pop %v1716
      %v1733 = vtanh.pop %v1717
      %v1734 = vtanh.pop %v1718
      %v1735 = vtanh.pop %v1719
      %v1736 = vtanh.pop %v1720
      %v1737 = vtanh.pop %v1721
      %v1738 = vtanh.pop %v1722
      %v1739 = vtanh.pop %v1723
      %v1740 = vtanh.pop %v1724
      %v1741 = vtanh.pop %v1725
      %v1742 = vtanh.pop %v1726
      %v1743 = vtanh.pop %v1727
      %v1744 = vtanh.pop %v1728
      %v1745 = vtanh.pop %v1729
      %v1746 = vtanh.pop %v1730
      %v1747 = vtanh.pop %v1731
      %v1748 = vperm.slane %v1647, 0
      %1750 = vset.pattern.permute.xlu0 0
      %1751 = vperm.xlu0 %1750, %v1732
      %v1752 = vpop.permute.xlu0 %1751
      %1755 = vset.pattern.permute.xlu0 0
      %1756 = vperm.xlu0 %1755, %v1733
      %v1757 = vpop.permute.xlu0 %1756
      %1760 = vset.pattern.permute.xlu0 0
      %1761 = vperm.xlu0 %1760, %v1734
      %v1762 = vpop.permute.xlu0 %1761
      %1765 = vset.pattern.permute.xlu0 0
      %1766 = vperm.xlu0 %1765, %v1735
      %v1767 = vpop.permute.xlu0 %1766
      %1770 = vset.pattern.permute.xlu0 0
      %1771 = vperm.xlu0 %1770, %v1736
      %v1772 = vpop.permute.xlu0 %1771
      %1775 = vset.pattern.permute.xlu0 0
      %1776 = vperm.xlu0 %1775, %v1737
      %v1777 = vpop.permute.xlu0 %1776
      %1780 = vset.pattern.permute.xlu0 0
      %1781 = vperm.xlu0 %1780, %v1738
      %v1782 = vpop.permute.xlu0 %1781
      %1785 = vset.pattern.permute.xlu0 0
      %1786 = vperm.xlu0 %1785, %v1739
      %v1787 = vpop.permute.xlu0 %1786
      %1790 = vset.pattern.permute.xlu0 0
      %1791 = vperm.xlu0 %1790, %v1740
      %v1792 = vpop.permute.xlu0 %1791
      %1795 = vset.pattern.permute.xlu0 0
      %1796 = vperm.xlu0 %1795, %v1741
      %v1797 = vpop.permute.xlu0 %1796
      %1800 = vset.pattern.permute.xlu0 0
      %1801 = vperm.xlu0 %1800, %v1742
      %v1802 = vpop.permute.xlu0 %1801
      %1805 = vset.pattern.permute.xlu0 0
      %1806 = vperm.xlu0 %1805, %v1743
      %v1807 = vpop.permute.xlu0 %1806
      %1810 = vset.pattern.permute.xlu0 0
      %1811 = vperm.xlu0 %1810, %v1744
      %v1812 = vpop.permute.xlu0 %1811
      %1815 = vset.pattern.permute.xlu0 0
      %1816 = vperm.xlu0 %1815, %v1745
      %v1817 = vpop.permute.xlu0 %1816
      %1820 = vset.pattern.permute.xlu0 0
      %1821 = vperm.xlu0 %1820, %v1746
      %v1822 = vpop.permute.xlu0 %1821
      %1825 = vset.pattern.permute.xlu0 0
      %1826 = vperm.xlu0 %1825, %v1747
      %v1827 = vpop.permute.xlu0 %1826
      %v1829 = vmul.f32 %v1748, %v1752
      %v1830 = vmul.f32 %v1748, %v1757
      %v1831 = vmul.f32 %v1748, %v1762
      %v1832 = vmul.f32 %v1748, %v1767
      %v1833 = vmul.f32 %v1748, %v1772
      %v1834 = vmul.f32 %v1748, %v1777
      %v1835 = vmul.f32 %v1748, %v1782
      %v1836 = vmul.f32 %v1748, %v1787
      %v1837 = vmul.f32 %v1748, %v1792
      %v1838 = vmul.f32 %v1748, %v1797
      %v1839 = vmul.f32 %v1748, %v1802
      %v1840 = vmul.f32 %v1748, %v1807
      %v1841 = vmul.f32 %v1748, %v1812
      %v1842 = vmul.f32 %v1748, %v1817
      %v1843 = vmul.f32 %v1748, %v1822
      %v1844 = vmul.f32 %v1748, %v1827
      %v1845 = vadd.f32 %v1501, %v1829
      %v1846 = vadd.f32 %v1502, %v1830
      %v1847 = vadd.f32 %v1503, %v1831
      %v1848 = vadd.f32 %v1504, %v1832
      %v1849 = vadd.f32 %v1505, %v1833
      %v1850 = vadd.f32 %v1506, %v1834
      %v1851 = vadd.f32 %v1507, %v1835
      %v1852 = vadd.f32 %v1508, %v1836
      %v1853 = vadd.f32 %v1509, %v1837
      %v1854 = vadd.f32 %v1510, %v1838
      %v1855 = vadd.f32 %v1511, %v1839
      %v1856 = vadd.f32 %v1512, %v1840
      %v1857 = vadd.f32 %v1513, %v1841
      %v1858 = vadd.f32 %v1514, %v1842
      %v1859 = vadd.f32 %v1515, %v1843
      %v1860 = vadd.f32 %v1516, %v1844
      %v1861 = vmul.f32 %v1732, %v1732
      %v1862 = vmul.f32 %v1733, %v1733
      %v1863 = vmul.f32 %v1734, %v1734
      %v1864 = vmul.f32 %v1735, %v1735
      %v1865 = vmul.f32 %v1736, %v1736
      %v1866 = vmul.f32 %v1737, %v1737
      %v1867 = vmul.f32 %v1738, %v1738
      %v1868 = vmul.f32 %v1739, %v1739
      %v1869 = vmul.f32 %v1740, %v1740
      %v1870 = vmul.f32 %v1741, %v1741
      %v1871 = vmul.f32 %v1742, %v1742
      %v1872 = vmul.f32 %v1743, %v1743
      %v1873 = vmul.f32 %v1744, %v1744
      %v1874 = vmul.f32 %v1745, %v1745
      %v1875 = vmul.f32 %v1746, %v1746
      %v1876 = vmul.f32 %v1747, %v1747
      %v1877 = vsub.f32 1.0, %v1861
      %v1878 = vsub.f32 1.0, %v1862
      %v1879 = vsub.f32 1.0, %v1863
      %v1880 = vsub.f32 1.0, %v1864
      %v1881 = vsub.f32 1.0, %v1865
      %v1882 = vsub.f32 1.0, %v1866
      %v1883 = vsub.f32 1.0, %v1867
      %v1884 = vsub.f32 1.0, %v1868
      %v1885 = vsub.f32 1.0, %v1869
      %v1886 = vsub.f32 1.0, %v1870
      %v1887 = vsub.f32 1.0, %v1871
      %v1888 = vsub.f32 1.0, %v1872
      %v1889 = vsub.f32 1.0, %v1873
      %v1890 = vsub.f32 1.0, %v1874
      %v1891 = vsub.f32 1.0, %v1875
      %v1892 = vsub.f32 1.0, %v1876
      %v1893 = vperm.slane %v1649, 0
      %v1894 = vmul.f32 %v1877, %v1893
      %v1895 = vmul.f32 %v1878, %v1893
      %v1896 = vmul.f32 %v1879, %v1893
      %v1897 = vmul.f32 %v1880, %v1893
      %v1898 = vmul.f32 %v1881, %v1893
      %v1899 = vmul.f32 %v1882, %v1893
      %v1900 = vmul.f32 %v1883, %v1893
      %v1901 = vmul.f32 %v1884, %v1893
      %v1902 = vmul.f32 %v1885, %v1893
      %v1903 = vmul.f32 %v1886, %v1893
      %v1904 = vmul.f32 %v1887, %v1893
      %v1905 = vmul.f32 %v1888, %v1893
      %v1906 = vmul.f32 %v1889, %v1893
      %v1907 = vmul.f32 %v1890, %v1893
      %v1908 = vmul.f32 %v1891, %v1893
      %v1909 = vmul.f32 %v1892, %v1893
      %v1910 = vadd.f32 %v1894, 1.0
      %v1911 = vadd.f32 %v1895, 1.0
      %v1912 = vadd.f32 %v1896, 1.0
      %v1913 = vadd.f32 %v1897, 1.0
      %v1914 = vadd.f32 %v1898, 1.0
      %v1915 = vadd.f32 %v1899, 1.0
      %v1916 = vadd.f32 %v1900, 1.0
      %v1917 = vadd.f32 %v1901, 1.0
      %v1918 = vadd.f32 %v1902, 1.0
      %v1919 = vadd.f32 %v1903, 1.0
      %v1920 = vadd.f32 %v1904, 1.0
      %v1921 = vadd.f32 %v1905, 1.0
      %v1922 = vadd.f32 %v1906, 1.0
      %v1923 = vadd.f32 %v1907, 1.0
      %v1924 = vadd.f32 %v1908, 1.0
      %v1925 = vadd.f32 %v1909, 1.0
      %v1926 = vand.u32 2147483647, %v1910
      %v1927 = vand.u32 2147483647, %v1911
      %v1928 = vand.u32 2147483647, %v1912
      %v1929 = vand.u32 2147483647, %v1913
      %v1930 = vand.u32 2147483647, %v1914
      %v1931 = vand.u32 2147483647, %v1915
      %v1932 = vand.u32 2147483647, %v1916
      %v1933 = vand.u32 2147483647, %v1917
      %v1934 = vand.u32 2147483647, %v1918
      %v1935 = vand.u32 2147483647, %v1919
      %v1936 = vand.u32 2147483647, %v1920
      %v1937 = vand.u32 2147483647, %v1921
      %v1938 = vand.u32 2147483647, %v1922
      %v1939 = vand.u32 2147483647, %v1923
      %v1940 = vand.u32 2147483647, %v1924
      %v1941 = vand.u32 2147483647, %v1925
      %v1942 = vlog2.pop %v1926
      %v1943 = vmul.f32 %v1942, 0.6931472
      %v1944 = vlog2.pop %v1927
      %v1945 = vmul.f32 %v1944, 0.6931472
      %v1946 = vlog2.pop %v1928
      %v1947 = vmul.f32 %v1946, 0.6931472
      %v1948 = vlog2.pop %v1929
      %v1949 = vmul.f32 %v1948, 0.6931472
      %v1950 = vlog2.pop %v1930
      %v1951 = vmul.f32 %v1950, 0.6931472
      %v1952 = vlog2.pop %v1931
      %v1953 = vmul.f32 %v1952, 0.6931472
      %v1954 = vlog2.pop %v1932
      %v1955 = vmul.f32 %v1954, 0.6931472
      %v1956 = vlog2.pop %v1933
      %v1957 = vmul.f32 %v1956, 0.6931472
      %v1958 = vlog2.pop %v1934
      %v1959 = vmul.f32 %v1958, 0.6931472
      %v1960 = vlog2.pop %v1935
      %v1961 = vmul.f32 %v1960, 0.6931472
      %v1962 = vlog2.pop %v1936
      %v1963 = vmul.f32 %v1962, 0.6931472
      %v1964 = vlog2.pop %v1937
      %v1965 = vmul.f32 %v1964, 0.6931472
      %v1966 = vlog2.pop %v1938
      %v1967 = vmul.f32 %v1966, 0.6931472
      %v1968 = vlog2.pop %v1939
      %v1969 = vmul.f32 %v1968, 0.6931472
      %v1970 = vlog2.pop %v1940
      %v1971 = vmul.f32 %v1970, 0.6931472
      %v1972 = vlog2.pop %v1941
      %v1973 = vmul.f32 %v1972, 0.6931472
      %v1974 = vadd.f32 %v1630, %v1943
      %v1975 = vadd.f32 %v1631, %v1945
      %v1976 = vadd.f32 %v1632, %v1947
      %v1977 = vadd.f32 %v1633, %v1949
      %v1978 = vadd.f32 %v1634, %v1951
      %v1979 = vadd.f32 %v1635, %v1953
      %v1980 = vadd.f32 %v1636, %v1955
      %v1981 = vadd.f32 %v1637, %v1957
      %v1982 = vadd.f32 %v1638, %v1959
      %v1983 = vadd.f32 %v1639, %v1961
      %v1984 = vadd.f32 %v1640, %v1963
      %v1985 = vadd.f32 %v1641, %v1965
      %v1986 = vadd.f32 %v1642, %v1967
      %v1987 = vadd.f32 %v1643, %v1969
      %v1988 = vadd.f32 %v1644, %v1971
      %v1989 = vadd.f32 %v1645, %v1973
      %1990 = vst.msk [vmem:[%s453] sm:$0xff] %vm517, %v1845
      %1991 = vst.msk [vmem:[%s453 + $0x8] sm:$0xff] %vm517, %v1846
      %1992 = vst.msk [vmem:[%s453 + $0x10] sm:$0xff] %vm517, %v1847
      %1993 = vst.msk [vmem:[%s453 + $0x18] sm:$0xff] %vm517, %v1848
      %1994 = vst.msk [vmem:[%s453 + $0x20] sm:$0xff] %vm517, %v1849
      %1995 = vst.msk [vmem:[%s453 + $0x28] sm:$0xff] %vm517, %v1850
      %1996 = vst.msk [vmem:[%s453 + $0x30] sm:$0xff] %vm517, %v1851
      %1997 = vst.msk [vmem:[%s453 + $0x38] sm:$0xff] %vm517, %v1852
      %1998 = vst.msk [vmem:[%s453 + $0x40] sm:$0xff] %vm517, %v1853
      %1999 = vst.msk [vmem:[%s453 + $0x48] sm:$0xff] %vm517, %v1854
      %2000 = vst.msk [vmem:[%s453 + $0x50] sm:$0xff] %vm517, %v1855
      %2001 = vst.msk [vmem:[%s453 + $0x58] sm:$0xff] %vm517, %v1856
      %2002 = vst.msk [vmem:[%s453 + $0x60] sm:$0xff] %vm517, %v1857
      %2003 = vst.msk [vmem:[%s453 + $0x68] sm:$0xff] %vm517, %v1858
      %2004 = vst.msk [vmem:[%s453 + $0x70] sm:$0xff] %vm517, %v1859
      %2005 = vst.msk [vmem:[%s453 + $0x78] sm:$0xff] %vm517, %v1860
      %v2006 = vld [vmem:[%s435] sm:$0xff]
      %v2007 = vld [vmem:[%s435 + $0x8] sm:$0xff]
      %v2008 = vld [vmem:[%s435 + $0x10] sm:$0xff]
      %v2009 = vld [vmem:[%s435 + $0x18] sm:$0xff]
      %v2010 = vld [vmem:[%s435 + $0x20] sm:$0xff]
      %v2011 = vld [vmem:[%s435 + $0x28] sm:$0xff]
      %v2012 = vld [vmem:[%s435 + $0x30] sm:$0xff]
      %v2013 = vld [vmem:[%s435 + $0x38] sm:$0xff]
      %v2014 = vld [vmem:[%s435 + $0x40] sm:$0xff]
      %v2015 = vld [vmem:[%s435 + $0x48] sm:$0xff]
      %v2016 = vld [vmem:[%s435 + $0x50] sm:$0xff]
      %v2017 = vld [vmem:[%s435 + $0x58] sm:$0xff]
      %v2018 = vld [vmem:[%s435 + $0x60] sm:$0xff]
      %v2019 = vld [vmem:[%s435 + $0x68] sm:$0xff]
      %v2020 = vld [vmem:[%s435 + $0x70] sm:$0xff]
      %v2021 = vld [vmem:[%s435 + $0x78] sm:$0xff]
      %v2022 = vsub.f32 %v1845, %v2006
      %v2023 = vsub.f32 %v1846, %v2007
      %v2024 = vsub.f32 %v1847, %v2008
      %v2025 = vsub.f32 %v1848, %v2009
      %v2026 = vsub.f32 %v1849, %v2010
      %v2027 = vsub.f32 %v1850, %v2011
      %v2028 = vsub.f32 %v1851, %v2012
      %v2029 = vsub.f32 %v1852, %v2013
      %v2030 = vsub.f32 %v1853, %v2014
      %v2031 = vsub.f32 %v1854, %v2015
      %v2032 = vsub.f32 %v1855, %v2016
      %v2033 = vsub.f32 %v1856, %v2017
      %v2034 = vsub.f32 %v1857, %v2018
      %v2035 = vsub.f32 %v1858, %v2019
      %v2036 = vsub.f32 %v1859, %v2020
      %v2037 = vsub.f32 %v1860, %v2021
      %v2038 = vmul.f32 %v2022, -0.5
      %v2039 = vmul.f32 %v2023, -0.5
      %v2040 = vmul.f32 %v2024, -0.5
      %v2041 = vmul.f32 %v2025, -0.5
      %v2042 = vmul.f32 %v2026, -0.5
      %v2043 = vmul.f32 %v2027, -0.5
      %v2044 = vmul.f32 %v2028, -0.5
      %v2045 = vmul.f32 %v2029, -0.5
      %v2046 = vmul.f32 %v2030, -0.5
      %v2047 = vmul.f32 %v2031, -0.5
      %v2048 = vmul.f32 %v2032, -0.5
      %v2049 = vmul.f32 %v2033, -0.5
      %v2050 = vmul.f32 %v2034, -0.5
      %v2051 = vmul.f32 %v2035, -0.5
      %v2052 = vmul.f32 %v2036, -0.5
      %v2053 = vmul.f32 %v2037, -0.5
      %v2054 = vmul.f32 %v2038, %v2022
      %v2055 = vmul.f32 %v2039, %v2023
      %v2056 = vmul.f32 %v2040, %v2024
      %v2057 = vmul.f32 %v2041, %v2025
      %v2058 = vmul.f32 %v2042, %v2026
      %v2059 = vmul.f32 %v2043, %v2027
      %v2060 = vmul.f32 %v2044, %v2028
      %v2061 = vmul.f32 %v2045, %v2029
      %v2062 = vmul.f32 %v2046, %v2030
      %v2063 = vmul.f32 %v2047, %v2031
      %v2064 = vmul.f32 %v2048, %v2032
      %v2065 = vmul.f32 %v2049, %v2033
      %v2066 = vmul.f32 %v2050, %v2034
      %v2067 = vmul.f32 %v2051, %v2035
      %v2068 = vmul.f32 %v2052, %v2036
      %v2069 = vmul.f32 %v2053, %v2037
      %v2070 = vld [vmem:[%s441] sm:$0xff]
      %v2071 = vld [vmem:[%s441 + $0x8] sm:$0xff]
      %v2072 = vld [vmem:[%s441 + $0x10] sm:$0xff]
      %v2073 = vld [vmem:[%s441 + $0x18] sm:$0xff]
      %v2074 = vld [vmem:[%s441 + $0x20] sm:$0xff]
      %v2075 = vld [vmem:[%s441 + $0x28] sm:$0xff]
      %v2076 = vld [vmem:[%s441 + $0x30] sm:$0xff]
      %v2077 = vld [vmem:[%s441 + $0x38] sm:$0xff]
      %v2078 = vld [vmem:[%s441 + $0x40] sm:$0xff]
      %v2079 = vld [vmem:[%s441 + $0x48] sm:$0xff]
      %v2080 = vld [vmem:[%s441 + $0x50] sm:$0xff]
      %v2081 = vld [vmem:[%s441 + $0x58] sm:$0xff]
      %v2082 = vld [vmem:[%s441 + $0x60] sm:$0xff]
      %v2083 = vld [vmem:[%s441 + $0x68] sm:$0xff]
      %v2084 = vld [vmem:[%s441 + $0x70] sm:$0xff]
      %v2085 = vld [vmem:[%s441 + $0x78] sm:$0xff]
      %v2086 = vrcp.pop %v2070
      %v2087 = vmul.f32 %v2070, %v2086
      %v2088 = vsub.f32 1.0, %v2087
      %v2089 = vmul.f32 %v2086, %v2088
      %v2090 = vadd.f32 %v2086, %v2089
      %vm2091 = vweird.f32 %v2070
      %vm2092 = vweird.f32 %v2086
      %vm2093 = vmor %vm2091, %vm2092
      %v2094 = vsel %vm2093, %v2086, %v2090
      %v2095 = vand.u32 2147483647, %v2070
      %vm2096 = vcmp.eq.f32.partialorder %v2095, 8.507059e+37
      %v2097 = vand.u32 %v2070, 2147483648
      %v2098 = vor.u32 1.1754944e-38, %v2097
      %v2099 = vsel %vm2096, %v2098, %v2094
      %v2100 = vmul.f32 %v2054, %v2099
      %v2101 = vrcp.pop %v2071
      %v2102 = vmul.f32 %v2071, %v2101
      %v2103 = vsub.f32 1.0, %v2102
      %v2104 = vmul.f32 %v2101, %v2103
      %v2105 = vadd.f32 %v2101, %v2104
      %vm2106 = vweird.f32 %v2071
      %vm2107 = vweird.f32 %v2101
      %vm2108 = vmor %vm2106, %vm2107
      %v2109 = vsel %vm2108, %v2101, %v2105
      %v2110 = vand.u32 2147483647, %v2071
      %vm2111 = vcmp.eq.f32.partialorder %v2110, 8.507059e+37
      %v2112 = vand.u32 %v2071, 2147483648
      %v2113 = vor.u32 1.1754944e-38, %v2112
      %v2114 = vsel %vm2111, %v2113, %v2109
      %v2115 = vmul.f32 %v2055, %v2114
      %v2116 = vrcp.pop %v2072
      %v2117 = vmul.f32 %v2072, %v2116
      %v2118 = vsub.f32 1.0, %v2117
      %v2119 = vmul.f32 %v2116, %v2118
      %v2120 = vadd.f32 %v2116, %v2119
      %vm2121 = vweird.f32 %v2072
      %vm2122 = vweird.f32 %v2116
      %vm2123 = vmor %vm2121, %vm2122
      %v2124 = vsel %vm2123, %v2116, %v2120
      %v2125 = vand.u32 2147483647, %v2072
      %vm2126 = vcmp.eq.f32.partialorder %v2125, 8.507059e+37
      %v2127 = vand.u32 %v2072, 2147483648
      %v2128 = vor.u32 1.1754944e-38, %v2127
      %v2129 = vsel %vm2126, %v2128, %v2124
      %v2130 = vmul.f32 %v2056, %v2129
      %v2131 = vrcp.pop %v2073
      %v2132 = vmul.f32 %v2073, %v2131
      %v2133 = vsub.f32 1.0, %v2132
      %v2134 = vmul.f32 %v2131, %v2133
      %v2135 = vadd.f32 %v2131, %v2134
      %vm2136 = vweird.f32 %v2073
      %vm2137 = vweird.f32 %v2131
      %vm2138 = vmor %vm2136, %vm2137
      %v2139 = vsel %vm2138, %v2131, %v2135
      %v2140 = vand.u32 2147483647, %v2073
      %vm2141 = vcmp.eq.f32.partialorder %v2140, 8.507059e+37
      %v2142 = vand.u32 %v2073, 2147483648
      %v2143 = vor.u32 1.1754944e-38, %v2142
      %v2144 = vsel %vm2141, %v2143, %v2139
      %v2145 = vmul.f32 %v2057, %v2144
      %v2146 = vrcp.pop %v2074
      %v2147 = vmul.f32 %v2074, %v2146
      %v2148 = vsub.f32 1.0, %v2147
      %v2149 = vmul.f32 %v2146, %v2148
      %v2150 = vadd.f32 %v2146, %v2149
      %vm2151 = vweird.f32 %v2074
      %vm2152 = vweird.f32 %v2146
      %vm2153 = vmor %vm2151, %vm2152
      %v2154 = vsel %vm2153, %v2146, %v2150
      %v2155 = vand.u32 2147483647, %v2074
      %vm2156 = vcmp.eq.f32.partialorder %v2155, 8.507059e+37
      %v2157 = vand.u32 %v2074, 2147483648
      %v2158 = vor.u32 1.1754944e-38, %v2157
      %v2159 = vsel %vm2156, %v2158, %v2154
      %v2160 = vmul.f32 %v2058, %v2159
      %v2161 = vrcp.pop %v2075
      %v2162 = vmul.f32 %v2075, %v2161
      %v2163 = vsub.f32 1.0, %v2162
      %v2164 = vmul.f32 %v2161, %v2163
      %v2165 = vadd.f32 %v2161, %v2164
      %vm2166 = vweird.f32 %v2075
      %vm2167 = vweird.f32 %v2161
      %vm2168 = vmor %vm2166, %vm2167
      %v2169 = vsel %vm2168, %v2161, %v2165
      %v2170 = vand.u32 2147483647, %v2075
      %vm2171 = vcmp.eq.f32.partialorder %v2170, 8.507059e+37
      %v2172 = vand.u32 %v2075, 2147483648
      %v2173 = vor.u32 1.1754944e-38, %v2172
      %v2174 = vsel %vm2171, %v2173, %v2169
      %v2175 = vmul.f32 %v2059, %v2174
      %v2176 = vrcp.pop %v2076
      %v2177 = vmul.f32 %v2076, %v2176
      %v2178 = vsub.f32 1.0, %v2177
      %v2179 = vmul.f32 %v2176, %v2178
      %v2180 = vadd.f32 %v2176, %v2179
      %vm2181 = vweird.f32 %v2076
      %vm2182 = vweird.f32 %v2176
      %vm2183 = vmor %vm2181, %vm2182
      %v2184 = vsel %vm2183, %v2176, %v2180
      %v2185 = vand.u32 2147483647, %v2076
      %vm2186 = vcmp.eq.f32.partialorder %v2185, 8.507059e+37
      %v2187 = vand.u32 %v2076, 2147483648
      %v2188 = vor.u32 1.1754944e-38, %v2187
      %v2189 = vsel %vm2186, %v2188, %v2184
      %v2190 = vmul.f32 %v2060, %v2189
      %v2191 = vrcp.pop %v2077
      %v2192 = vmul.f32 %v2077, %v2191
      %v2193 = vsub.f32 1.0, %v2192
      %v2194 = vmul.f32 %v2191, %v2193
      %v2195 = vadd.f32 %v2191, %v2194
      %vm2196 = vweird.f32 %v2077
      %vm2197 = vweird.f32 %v2191
      %vm2198 = vmor %vm2196, %vm2197
      %v2199 = vsel %vm2198, %v2191, %v2195
      %v2200 = vand.u32 2147483647, %v2077
      %vm2201 = vcmp.eq.f32.partialorder %v2200, 8.507059e+37
      %v2202 = vand.u32 %v2077, 2147483648
      %v2203 = vor.u32 1.1754944e-38, %v2202
      %v2204 = vsel %vm2201, %v2203, %v2199
      %v2205 = vmul.f32 %v2061, %v2204
      %v2206 = vrcp.pop %v2078
      %v2207 = vmul.f32 %v2078, %v2206
      %v2208 = vsub.f32 1.0, %v2207
      %v2209 = vmul.f32 %v2206, %v2208
      %v2210 = vadd.f32 %v2206, %v2209
      %vm2211 = vweird.f32 %v2078
      %vm2212 = vweird.f32 %v2206
      %vm2213 = vmor %vm2211, %vm2212
      %v2214 = vsel %vm2213, %v2206, %v2210
      %v2215 = vand.u32 2147483647, %v2078
      %vm2216 = vcmp.eq.f32.partialorder %v2215, 8.507059e+37
      %v2217 = vand.u32 %v2078, 2147483648
      %v2218 = vor.u32 1.1754944e-38, %v2217
      %v2219 = vsel %vm2216, %v2218, %v2214
      %v2220 = vmul.f32 %v2062, %v2219
      %v2221 = vrcp.pop %v2079
      %v2222 = vmul.f32 %v2079, %v2221
      %v2223 = vsub.f32 1.0, %v2222
      %v2224 = vmul.f32 %v2221, %v2223
      %v2225 = vadd.f32 %v2221, %v2224
      %vm2226 = vweird.f32 %v2079
      %vm2227 = vweird.f32 %v2221
      %vm2228 = vmor %vm2226, %vm2227
      %v2229 = vsel %vm2228, %v2221, %v2225
      %v2230 = vand.u32 2147483647, %v2079
      %vm2231 = vcmp.eq.f32.partialorder %v2230, 8.507059e+37
      %v2232 = vand.u32 %v2079, 2147483648
      %v2233 = vor.u32 1.1754944e-38, %v2232
      %v2234 = vsel %vm2231, %v2233, %v2229
      %v2235 = vmul.f32 %v2063, %v2234
      %v2236 = vrcp.pop %v2080
      %v2237 = vmul.f32 %v2080, %v2236
      %v2238 = vsub.f32 1.0, %v2237
      %v2239 = vmul.f32 %v2236, %v2238
      %v2240 = vadd.f32 %v2236, %v2239
      %vm2241 = vweird.f32 %v2080
      %vm2242 = vweird.f32 %v2236
      %vm2243 = vmor %vm2241, %vm2242
      %v2244 = vsel %vm2243, %v2236, %v2240
      %v2245 = vand.u32 2147483647, %v2080
      %vm2246 = vcmp.eq.f32.partialorder %v2245, 8.507059e+37
      %v2247 = vand.u32 %v2080, 2147483648
      %v2248 = vor.u32 1.1754944e-38, %v2247
      %v2249 = vsel %vm2246, %v2248, %v2244
      %v2250 = vmul.f32 %v2064, %v2249
      %v2251 = vrcp.pop %v2081
      %v2252 = vmul.f32 %v2081, %v2251
      %v2253 = vsub.f32 1.0, %v2252
      %v2254 = vmul.f32 %v2251, %v2253
      %v2255 = vadd.f32 %v2251, %v2254
      %vm2256 = vweird.f32 %v2081
      %vm2257 = vweird.f32 %v2251
      %vm2258 = vmor %vm2256, %vm2257
      %v2259 = vsel %vm2258, %v2251, %v2255
      %v2260 = vand.u32 2147483647, %v2081
      %vm2261 = vcmp.eq.f32.partialorder %v2260, 8.507059e+37
      %v2262 = vand.u32 %v2081, 2147483648
      %v2263 = vor.u32 1.1754944e-38, %v2262
      %v2264 = vsel %vm2261, %v2263, %v2259
      %v2265 = vmul.f32 %v2065, %v2264
      %v2266 = vrcp.pop %v2082
      %v2267 = vmul.f32 %v2082, %v2266
      %v2268 = vsub.f32 1.0, %v2267
      %v2269 = vmul.f32 %v2266, %v2268
      %v2270 = vadd.f32 %v2266, %v2269
      %vm2271 = vweird.f32 %v2082
      %vm2272 = vweird.f32 %v2266
      %vm2273 = vmor %vm2271, %vm2272
      %v2274 = vsel %vm2273, %v2266, %v2270
      %v2275 = vand.u32 2147483647, %v2082
      %vm2276 = vcmp.eq.f32.partialorder %v2275, 8.507059e+37
      %v2277 = vand.u32 %v2082, 2147483648
      %v2278 = vor.u32 1.1754944e-38, %v2277
      %v2279 = vsel %vm2276, %v2278, %v2274
      %v2280 = vmul.f32 %v2066, %v2279
      %v2281 = vrcp.pop %v2083
      %v2282 = vmul.f32 %v2083, %v2281
      %v2283 = vsub.f32 1.0, %v2282
      %v2284 = vmul.f32 %v2281, %v2283
      %v2285 = vadd.f32 %v2281, %v2284
      %vm2286 = vweird.f32 %v2083
      %vm2287 = vweird.f32 %v2281
      %vm2288 = vmor %vm2286, %vm2287
      %v2289 = vsel %vm2288, %v2281, %v2285
      %v2290 = vand.u32 2147483647, %v2083
      %vm2291 = vcmp.eq.f32.partialorder %v2290, 8.507059e+37
      %v2292 = vand.u32 %v2083, 2147483648
      %v2293 = vor.u32 1.1754944e-38, %v2292
      %v2294 = vsel %vm2291, %v2293, %v2289
      %v2295 = vmul.f32 %v2067, %v2294
      %v2296 = vrcp.pop %v2084
      %v2297 = vmul.f32 %v2084, %v2296
      %v2298 = vsub.f32 1.0, %v2297
      %v2299 = vmul.f32 %v2296, %v2298
      %v2300 = vadd.f32 %v2296, %v2299
      %vm2301 = vweird.f32 %v2084
      %vm2302 = vweird.f32 %v2296
      %vm2303 = vmor %vm2301, %vm2302
      %v2304 = vsel %vm2303, %v2296, %v2300
      %v2305 = vand.u32 2147483647, %v2084
      %vm2306 = vcmp.eq.f32.partialorder %v2305, 8.507059e+37
      %v2307 = vand.u32 %v2084, 2147483648
      %v2308 = vor.u32 1.1754944e-38, %v2307
      %v2309 = vsel %vm2306, %v2308, %v2304
      %v2310 = vmul.f32 %v2068, %v2309
      %v2311 = vrcp.pop %v2085
      %v2312 = vmul.f32 %v2085, %v2311
      %v2313 = vsub.f32 1.0, %v2312
      %v2314 = vmul.f32 %v2311, %v2313
      %v2315 = vadd.f32 %v2311, %v2314
      %vm2316 = vweird.f32 %v2085
      %vm2317 = vweird.f32 %v2311
      %vm2318 = vmor %vm2316, %vm2317
      %v2319 = vsel %vm2318, %v2311, %v2315
      %v2320 = vand.u32 2147483647, %v2085
      %vm2321 = vcmp.eq.f32.partialorder %v2320, 8.507059e+37
      %v2322 = vand.u32 %v2085, 2147483648
      %v2323 = vor.u32 1.1754944e-38, %v2322
      %v2324 = vsel %vm2321, %v2323, %v2319
      %v2325 = vmul.f32 %v2069, %v2324
      %v2326 = vsel %vm517, %v2100, 0.0
      %2327 = vadd.xlane.f32.xlu0 %v2326
      %v2328 = vpop.xlane.xlu0 %2327
      %v2329 = vsel %vm517, %v2115, 0.0
      %2330 = vadd.xlane.f32.xlu0 %v2329
      %v2331 = vpop.xlane.xlu0 %2330
      %v2332 = vsel %vm517, %v2130, 0.0
      %2333 = vadd.xlane.f32.xlu0 %v2332
      %v2334 = vpop.xlane.xlu0 %2333
      %v2335 = vsel %vm517, %v2145, 0.0
      %2336 = vadd.xlane.f32.xlu0 %v2335
      %v2337 = vpop.xlane.xlu0 %2336
      %v2338 = vsel %vm517, %v2160, 0.0
      %2339 = vadd.xlane.f32.xlu0 %v2338
      %v2340 = vpop.xlane.xlu0 %2339
      %v2341 = vsel %vm517, %v2175, 0.0
      %2342 = vadd.xlane.f32.xlu0 %v2341
      %v2343 = vpop.xlane.xlu0 %2342
      %v2344 = vsel %vm517, %v2190, 0.0
      %2345 = vadd.xlane.f32.xlu0 %v2344
      %v2346 = vpop.xlane.xlu0 %2345
      %v2347 = vsel %vm517, %v2205, 0.0
      %2348 = vadd.xlane.f32.xlu0 %v2347
      %v2349 = vpop.xlane.xlu0 %2348
      %v2350 = vsel %vm517, %v2220, 0.0
      %2351 = vadd.xlane.f32.xlu0 %v2350
      %v2352 = vpop.xlane.xlu0 %2351
      %v2353 = vsel %vm517, %v2235, 0.0
      %2354 = vadd.xlane.f32.xlu0 %v2353
      %v2355 = vpop.xlane.xlu0 %2354
      %v2356 = vsel %vm517, %v2250, 0.0
      %2357 = vadd.xlane.f32.xlu0 %v2356
      %v2358 = vpop.xlane.xlu0 %2357
      %v2359 = vsel %vm517, %v2265, 0.0
      %2360 = vadd.xlane.f32.xlu0 %v2359
      %v2361 = vpop.xlane.xlu0 %2360
      %v2362 = vsel %vm517, %v2280, 0.0
      %2363 = vadd.xlane.f32.xlu0 %v2362
      %v2364 = vpop.xlane.xlu0 %2363
      %v2365 = vsel %vm517, %v2295, 0.0
      %2366 = vadd.xlane.f32.xlu0 %v2365
      %v2367 = vpop.xlane.xlu0 %2366
      %v2368 = vsel %vm517, %v2310, 0.0
      %2369 = vadd.xlane.f32.xlu0 %v2368
      %v2370 = vpop.xlane.xlu0 %2369
      %v2371 = vsel %vm517, %v2325, 0.0
      %2372 = vadd.xlane.f32.xlu0 %v2371
      %v2373 = vpop.xlane.xlu0 %2372
      %vm2374 = vcmask 7168
      %2375 = vst.msk [vmem:[%s459] sm:$0xff] %vm2374, %v598
      %2376 = vst.msk [vmem:[%s459 + $0x8] sm:$0xff] %vm2374, %v599
      %2377 = vst.msk [vmem:[%s459 + $0x10] sm:$0xff] %vm2374, %v600
      %2378 = vst.msk [vmem:[%s459 + $0x18] sm:$0xff] %vm2374, %v601
      %2379 = vst.msk [vmem:[%s459 + $0x20] sm:$0xff] %vm2374, %v602
      %2380 = vst.msk [vmem:[%s459 + $0x28] sm:$0xff] %vm2374, %v603
      %2381 = vst.msk [vmem:[%s459 + $0x30] sm:$0xff] %vm2374, %v604
      %2382 = vst.msk [vmem:[%s459 + $0x38] sm:$0xff] %vm2374, %v605
      %2383 = vst.msk [vmem:[%s459 + $0x40] sm:$0xff] %vm2374, %v606
      %2384 = vst.msk [vmem:[%s459 + $0x48] sm:$0xff] %vm2374, %v607
      %2385 = vst.msk [vmem:[%s459 + $0x50] sm:$0xff] %vm2374, %v608
      %2386 = vst.msk [vmem:[%s459 + $0x58] sm:$0xff] %vm2374, %v609
      %2387 = vst.msk [vmem:[%s459 + $0x60] sm:$0xff] %vm2374, %v610
      %2388 = vst.msk [vmem:[%s459 + $0x68] sm:$0xff] %vm2374, %v611
      %2389 = vst.msk [vmem:[%s459 + $0x70] sm:$0xff] %vm2374, %v612
      %2390 = vst.msk [vmem:[%s459 + $0x78] sm:$0xff] %vm2374, %v613
      %2407 = vrot.lane.b32.xlu0 %v1974, 1
      %v2408 = vpop.permute.xlu0 %2407
      %2409 = vrot.lane.b32.xlu0 %v1975, 1
      %v2410 = vpop.permute.xlu0 %2409
      %2411 = vrot.lane.b32.xlu0 %v1976, 1
      %v2412 = vpop.permute.xlu0 %2411
      %2413 = vrot.lane.b32.xlu0 %v1977, 1
      %v2414 = vpop.permute.xlu0 %2413
      %2415 = vrot.lane.b32.xlu0 %v1978, 1
      %v2416 = vpop.permute.xlu0 %2415
      %2417 = vrot.lane.b32.xlu0 %v1979, 1
      %v2418 = vpop.permute.xlu0 %2417
      %2419 = vrot.lane.b32.xlu0 %v1980, 1
      %v2420 = vpop.permute.xlu0 %2419
      %2421 = vrot.lane.b32.xlu0 %v1981, 1
      %v2422 = vpop.permute.xlu0 %2421
      %2423 = vrot.lane.b32.xlu0 %v1982, 1
      %v2424 = vpop.permute.xlu0 %2423
      %2425 = vrot.lane.b32.xlu0 %v1983, 1
      %v2426 = vpop.permute.xlu0 %2425
      %2427 = vrot.lane.b32.xlu0 %v1984, 1
      %v2428 = vpop.permute.xlu0 %2427
      %2429 = vrot.lane.b32.xlu0 %v1985, 1
      %v2430 = vpop.permute.xlu0 %2429
      %2431 = vrot.lane.b32.xlu0 %v1986, 1
      %v2432 = vpop.permute.xlu0 %2431
      %2433 = vrot.lane.b32.xlu0 %v1987, 1
      %v2434 = vpop.permute.xlu0 %2433
      %2435 = vrot.lane.b32.xlu0 %v1988, 1
      %v2436 = vpop.permute.xlu0 %2435
      %2437 = vrot.lane.b32.xlu0 %v1989, 1
      %v2438 = vpop.permute.xlu0 %2437
      %vm2455 = vcmask 15368
      %2456 = vst.msk [vmem:[%s459] sm:$0xff] %vm2455, %v2408
      %2457 = vst.msk [vmem:[%s459 + $0x8] sm:$0xff] %vm2455, %v2410
      %2458 = vst.msk [vmem:[%s459 + $0x10] sm:$0xff] %vm2455, %v2412
      %2459 = vst.msk [vmem:[%s459 + $0x18] sm:$0xff] %vm2455, %v2414
      %2460 = vst.msk [vmem:[%s459 + $0x20] sm:$0xff] %vm2455, %v2416
      %2461 = vst.msk [vmem:[%s459 + $0x28] sm:$0xff] %vm2455, %v2418
      %2462 = vst.msk [vmem:[%s459 + $0x30] sm:$0xff] %vm2455, %v2420
      %2463 = vst.msk [vmem:[%s459 + $0x38] sm:$0xff] %vm2455, %v2422
      %2464 = vst.msk [vmem:[%s459 + $0x40] sm:$0xff] %vm2455, %v2424
      %2465 = vst.msk [vmem:[%s459 + $0x48] sm:$0xff] %vm2455, %v2426
      %2466 = vst.msk [vmem:[%s459 + $0x50] sm:$0xff] %vm2455, %v2428
      %2467 = vst.msk [vmem:[%s459 + $0x58] sm:$0xff] %vm2455, %v2430
      %2468 = vst.msk [vmem:[%s459 + $0x60] sm:$0xff] %vm2455, %v2432
      %2469 = vst.msk [vmem:[%s459 + $0x68] sm:$0xff] %vm2455, %v2434
      %2470 = vst.msk [vmem:[%s459 + $0x70] sm:$0xff] %vm2455, %v2436
      %2471 = vst.msk [vmem:[%s459 + $0x78] sm:$0xff] %vm2455, %v2438
      %vm2472 = vcmask 23568
      %2473 = vst.msk [vmem:[%s459] sm:$0xff] %vm2472, %v2328
      %2474 = vst.msk [vmem:[%s459 + $0x8] sm:$0xff] %vm2472, %v2331
      %2475 = vst.msk [vmem:[%s459 + $0x10] sm:$0xff] %vm2472, %v2334
      %2476 = vst.msk [vmem:[%s459 + $0x18] sm:$0xff] %vm2472, %v2337
      %2477 = vst.msk [vmem:[%s459 + $0x20] sm:$0xff] %vm2472, %v2340
      %2478 = vst.msk [vmem:[%s459 + $0x28] sm:$0xff] %vm2472, %v2343
      %2479 = vst.msk [vmem:[%s459 + $0x30] sm:$0xff] %vm2472, %v2346
      %2480 = vst.msk [vmem:[%s459 + $0x38] sm:$0xff] %vm2472, %v2349
      %2481 = vst.msk [vmem:[%s459 + $0x40] sm:$0xff] %vm2472, %v2352
      %2482 = vst.msk [vmem:[%s459 + $0x48] sm:$0xff] %vm2472, %v2355
      %2483 = vst.msk [vmem:[%s459 + $0x50] sm:$0xff] %vm2472, %v2358
      %2484 = vst.msk [vmem:[%s459 + $0x58] sm:$0xff] %vm2472, %v2361
      %2485 = vst.msk [vmem:[%s459 + $0x60] sm:$0xff] %vm2472, %v2364
      %2486 = vst.msk [vmem:[%s459 + $0x68] sm:$0xff] %vm2472, %v2367
      %2487 = vst.msk [vmem:[%s459 + $0x70] sm:$0xff] %vm2472, %v2370
      %2488 = vst.msk [vmem:[%s459 + $0x78] sm:$0xff] %vm2472, %v2373
      %s2489 = smul.u32 16, %s23
      %p2490 = scmp.lt.s32.totalorder %s2489, 31
      %s2491 = scalar_select %p2490, %s2489, 31
      %s2492 = smul.addr %s2491, 8
      %s2493 = scalar_lea.vmem %s9, %s2492
      %s2494 = smul.u32 16, %s23
      %p2495 = scmp.lt.s32.totalorder %s2494, 31
      %s2496 = scalar_select %p2495, %s2494, 31
      %s2497 = smul.addr %s2496, 8
      %s2498 = scalar_lea.vmem %s10, %s2497
      %s2499 = smul.u32 16, %s23
      %p2500 = scmp.lt.s32.totalorder %s2499, 31
      %s2501 = scalar_select %p2500, %s2499, 31
      %s2502 = smul.addr %s2501, 8
      %s2503 = scalar_lea.vmem %s11, %s2502
      // Predicated region
      $region57: #{tpu_custom_call.1} parent=55 // pred_check
        %p2504 = pneg %p245
      $region58: #{tpu_custom_call.1} parent=55 // pred_check_branch
        %2506 = sbr.rel (%p2504) target = $region60
      $region59: #{tpu_custom_call.1} parent=55 // pred_region
        %s2507 = smul.u32 16, %s23
      $region60: #{tpu_custom_call.1} parent=55 // pred_fallthru
        _
      // Predicated region
      $region61: #{tpu_custom_call.1} parent=55 // pred_check
        %p2508 = pneg %p271
      $region62: #{tpu_custom_call.1} parent=55 // pred_check_branch
        %2510 = sbr.rel (%p2508) target = $region64
      $region63: #{tpu_custom_call.1} parent=55 // pred_region
        %s2511 = smul.u32 16, %s23
      $region64: #{tpu_custom_call.1} parent=55 // pred_fallthru
        _
      // Predicated region
      $region65: #{tpu_custom_call.1} parent=55 // pred_check
        %p2512 = pneg %p297
      $region66: #{tpu_custom_call.1} parent=55 // pred_check_branch
        %2514 = sbr.rel (%p2512) target = $region68
      $region67: #{tpu_custom_call.1} parent=55 // pred_region
        %s2515 = smul.u32 16, %s23
      $region68: #{tpu_custom_call.1} parent=55 // pred_fallthru
        _
    $region56: #{tpu_custom_call.1} parent=5 // pred_fallthru
      _
    %p2516 = scmp.le.s32.totalorder 2, %s18
    // Predicated region
    $region69: #{tpu_custom_call.1} parent=5 // pred_check
      %p2517 = pneg %p2516
    $region70: #{tpu_custom_call.1} parent=5 // pred_check_branch
      %2519 = sbr.rel (%p2517) target = $region72
    $region71: #{tpu_custom_call.1} parent=5 // pred_region
      %s2520 = ssub.s32 %s18, 2
      // Predicated region
      $region73: #{tpu_custom_call.1} parent=71 // pred_check
        %p2521 = pneg %p251
      $region74: #{tpu_custom_call.1} parent=71 // pred_check_branch
        %2523 = sbr.rel (%p2521) target = $region76
      $region75: #{tpu_custom_call.1} parent=71 // pred_region
        %s2524 = smul.u32 16, %s24
        %p2525 = scmp.lt.s32.totalorder %s2524, 31
        %s2526 = scalar_select %p2525, %s2524, 31
        %s2527 = smul.addr %s2526, 8
        %s2528 = scalar_lea.vmem %s9, %s2527
      $region76: #{tpu_custom_call.1} parent=71 // pred_fallthru
        _
      // Predicated region
      $region77: #{tpu_custom_call.1} parent=71 // pred_check
        %p2529 = pneg %p277
      $region78: #{tpu_custom_call.1} parent=71 // pred_check_branch
        %2531 = sbr.rel (%p2529) target = $region80
      $region79: #{tpu_custom_call.1} parent=71 // pred_region
        %s2532 = smul.u32 16, %s24
        %p2533 = scmp.lt.s32.totalorder %s2532, 31
        %s2534 = scalar_select %p2533, %s2532, 31
        %s2535 = smul.addr %s2534, 8
        %s2536 = scalar_lea.vmem %s10, %s2535
      $region80: #{tpu_custom_call.1} parent=71 // pred_fallthru
        _
      // Predicated region
      $region81: #{tpu_custom_call.1} parent=71 // pred_check
        %p2537 = pneg %p303
      $region82: #{tpu_custom_call.1} parent=71 // pred_check_branch
        %2539 = sbr.rel (%p2537) target = $region84
      $region83: #{tpu_custom_call.1} parent=71 // pred_region
        %s2540 = smul.u32 16, %s24
        %p2541 = scmp.lt.s32.totalorder %s2540, 31
        %s2542 = scalar_select %p2541, %s2540, 31
        %s2543 = smul.addr %s2542, 8
        %s2544 = scalar_lea.vmem %s11, %s2543
      $region84: #{tpu_custom_call.1} parent=71 // pred_fallthru
        _
    $region72: #{tpu_custom_call.1} parent=5 // pred_fallthru
      _
  $region6: #{tpu_custom_call.1} parent=0 // loop_footer
    %s22 = sadd.s32 1, %s18
  $region7: #{tpu_custom_call.1} parent=0 // loop_footer_branch
    %17 = sbr.rel target = $region3
  $region8: #{tpu_custom_call.1} parent=0 // loop_exit
    _

</llo_original>
